<compile_context>
chip_gen: v6e
topology: v6e:2x2x1
jax: 0.10.0
libtpu: 0.0.40
codegen_flags: <defaults>
</compile_context>

<pallas_src>
import functools

import jax
import jax.numpy as jnp
from jax.experimental import pallas as pl
from jax.experimental.pallas import tpu as pltpu


# ----------------------------------------------------------------------------
# Pallas kernels: fused matmul(s) + bias (+ residual) (+ ReLU), f32 epilogue
# ----------------------------------------------------------------------------
def _make_kernel(relu: bool, has_residual: bool, has_second: bool):
    def kernel(*refs):
        if has_second:
            x_ref, w_ref, b_ref, x2_ref, w2_ref, b2_ref, o_ref = refs
        elif has_residual:
            x_ref, w_ref, b_ref, r_ref, o_ref = refs
        else:
            x_ref, w_ref, b_ref, o_ref = refs

        acc = jnp.dot(x_ref[...], w_ref[...],
                      preferred_element_type=jnp.float32)
        y = acc + b_ref[...]
        if has_second:
            y = y + jnp.dot(x2_ref[...], w2_ref[...],
                            preferred_element_type=jnp.float32) + b2_ref[...]
        if has_residual:
            y = y + r_ref[...].astype(jnp.float32)
        if relu:
            y = jnp.maximum(y, 0.0)
        o_ref[...] = y.astype(o_ref.dtype)

    return kernel


def _round_up(x, m):
    return ((x + m - 1) // m) * m


# Conservative VMEM budget for double-buffered tiles: fits v7x's 64 MiB
# physical VMEM with headroom; plenty below v5e/v6e's 128 MiB.
_VMEM_BUDGET = 48 * 1024 * 1024


def _tile_bytes(tm, K, Cout, K2, has_res):
    b = tm * K * 2 + K * Cout * 2 + Cout * 4 + tm * Cout * 4   # x, w, bias, out
    if K2:
        b += tm * K2 * 2 + K2 * Cout * 2 + Cout * 4            # x2, w2, bias2
    if has_res:
        b += tm * Cout * 4                                      # residual
    return 2 * b                                                # double-buffer


def fused_matmul(x, w, b, *, relu, out_dtype=jnp.float32,
                 residual=None, x2=None, w2=None, b2=None, tm=512):
    """out = [relu]( x@w + b [+ x2@w2 + b2] [+ residual] ).

    x/x2/w/w2 are cast to bf16 for the MXU; accumulation and the epilogue
    (bias, residual add, ReLU) are in f32.
    """
    assert not (residual is not None and x2 is not None)
    M, K = x.shape
    Kw, Cout = w.shape
    assert K == Kw
    K2 = 0 if w2 is None else w2.shape[0]
    has_res = residual is not None
    has_second = x2 is not None

    # M tile: multiple of 8, <= padded problem size, and small enough that
    # double-buffered tiles stay inside the VMEM budget.
    tm = _round_up(min(tm, _round_up(M, 8)), 8)
    while tm > 64 and _tile_bytes(tm, K, Cout, K2, has_res) > _VMEM_BUDGET:
        tm = _round_up(tm // 2, 8)

    M_pad = _round_up(M, tm)
    grid = (M_pad // tm,)

    def pad_rows(a):
        if a.shape[0] == M_pad:
            return a
        return jnp.pad(a, ((0, M_pad - a.shape[0]), (0, 0)))

    x_p = pad_rows(x.astype(jnp.bfloat16))
    w_b = w.astype(jnp.bfloat16)
    b_2d = b.reshape(1, Cout).astype(jnp.float32)

    in_specs = [
        pl.BlockSpec((tm, K), lambda i: (i, 0)),
        pl.BlockSpec((K, Cout), lambda i: (0, 0)),
        pl.BlockSpec((1, Cout), lambda i: (0, 0)),
    ]
    args = [x_p, w_b, b_2d]
    flops = 2 * M_pad * K * Cout

    if has_second:
        x2_p = pad_rows(x2.astype(jnp.bfloat16))
        w2_b = w2.astype(jnp.bfloat16)
        b2_2d = b2.reshape(1, Cout).astype(jnp.float32)
        in_specs += [
            pl.BlockSpec((tm, K2), lambda i: (i, 0)),
            pl.BlockSpec((K2, Cout), lambda i: (0, 0)),
            pl.BlockSpec((1, Cout), lambda i: (0, 0)),
        ]
        args += [x2_p, w2_b, b2_2d]
        flops += 2 * M_pad * K2 * Cout
    elif has_res:
        r_p = pad_rows(residual.astype(jnp.float32))
        in_specs.append(pl.BlockSpec((tm, Cout), lambda i: (i, 0)))
        args.append(r_p)

    bytes_accessed = sum(int(a.size) * a.dtype.itemsize for a in args)
    bytes_accessed += int(M_pad) * int(Cout) * jnp.dtype(out_dtype).itemsize

    need = _tile_bytes(tm, K, Cout, K2, has_res)
    vmem_limit = int(min(max(need + (8 << 20), 32 << 20), 60 << 20))

    out = pl.pallas_call(
        _make_kernel(relu, has_res, has_second),
        out_shape=jax.ShapeDtypeStruct((M_pad, Cout), out_dtype),
        grid=grid,
        in_specs=in_specs,
        out_specs=pl.BlockSpec((tm, Cout), lambda i: (i, 0)),
        compiler_params=pltpu.CompilerParams(
            dimension_semantics=("parallel",),
            vmem_limit_bytes=vmem_limit),
        cost_estimate=pl.CostEstimate(
            flops=flops, transcendentals=0, bytes_accessed=bytes_accessed),
    )(*args)
    return out[:M] if M_pad != M else out


# ----------------------------------------------------------------------------
# Glue: im2col (bf16), BN folding, weight reshaping
# ----------------------------------------------------------------------------
def im2col(x_nhwc, kh, kw, stride, dilation, padding):
    """Extract kh x kw patches. Returns (N*Ho*Wo, kh*kw*C), Ho, Wo."""
    N, H, W, C = x_nhwc.shape
    xp = jnp.pad(x_nhwc, ((0, 0), (padding, padding), (padding, padding), (0, 0)))
    Ho = (H + 2 * padding - dilation * (kh - 1) - 1) // stride + 1
    Wo = (W + 2 * padding - dilation * (kw - 1) - 1) // stride + 1
    cols = []
    for i in range(kh):
        for j in range(kw):
            r0 = i * dilation
            c0 = j * dilation
            patch = xp[:, r0: r0 + (Ho - 1) * stride + 1: stride,
                          c0: c0 + (Wo - 1) * stride + 1: stride, :]
            cols.append(patch)
    cols = jnp.concatenate(cols, axis=-1)          # (N, Ho, Wo, kh*kw*C)
    return cols.reshape(N * Ho * Wo, kh * kw * C), Ho, Wo


def fold_bn(gamma, beta, mean, var, eps=1e-5):
    scale = gamma / jnp.sqrt(var + eps)
    bias = beta - mean * scale
    return scale, bias


def w1x1_to_2d(w_oihw):               # (Cout, Cin, 1, 1) -> (Cin, Cout)
    return jnp.transpose(w_oihw[:, :, 0, 0], (1, 0))


def w3x3_to_2d(w_oihw):               # (Cout, Cin, 3, 3) -> (3*3*Cin, Cout)
    return jnp.transpose(w_oihw, (2, 3, 1, 0)).reshape(-1, w_oihw.shape[0])


# ----------------------------------------------------------------------------
# Bottleneck forward (Pallas hot path)
# ----------------------------------------------------------------------------
def bottleneck_forward(x_nchw, p, *, stride, dilation, tm=512):
    x = jnp.transpose(x_nchw, (0, 2, 3, 1)).astype(jnp.float32)  # NHWC
    N, H, W, Cin = x.shape
    planes = p["w1"].shape[0]
    cexp = p["w3"].shape[0]

    # conv1 (1x1) + bn1 + relu  -> bf16 intermediate
    s1, b1 = fold_bn(*p["bn1"])
    w1 = w1x1_to_2d(p["w1"]) * s1[None, :]
    y = fused_matmul(x.reshape(-1, Cin), w1, b1, relu=True,
                     out_dtype=jnp.bfloat16, tm=tm)
    y = y.reshape(N, H, W, planes)

    # conv2 (3x3, stride, dilation, padding=dilation) + bn2 + relu
    s2, b2 = fold_bn(*p["bn2"])
    w2 = w3x3_to_2d(p["w2"]) * s2[None, :]
    cols, Ho, Wo = im2col(y, 3, 3, stride, dilation, dilation)   # bf16 cols
    y = fused_matmul(cols, w2, b2, relu=True,
                     out_dtype=jnp.bfloat16, tm=tm)              # (N*Ho*Wo, planes)

    # conv3 (1x1) + bn3 + skip + relu (single fused kernel)
    s3, b3 = fold_bn(*p["bn3"])
    w3 = w1x1_to_2d(p["w3"]) * s3[None, :]

    if p.get("wd") is not None:
        # downsample 1x1 conv fused into the conv3 kernel (two dots, one call)
        sd, bd = fold_bn(*p["bnd"])
        wd = w1x1_to_2d(p["wd"]) * sd[None, :]
        xs = x[:, ::stride, ::stride, :].reshape(-1, Cin)
        out = fused_matmul(y, w3, b3, relu=True, out_dtype=jnp.float32,
                           x2=xs, w2=wd, b2=bd, tm=tm)
    else:
        skip = x.reshape(-1, Cin)                                 # Cin == cexp
        out = fused_matmul(y, w3, b3, relu=True, out_dtype=jnp.float32,
                           residual=skip, tm=tm)

    out = out.reshape(N, Ho, Wo, cexp)
    return jnp.transpose(out, (0, 3, 1, 2))        # back to NCHW


# ----------------------------------------------------------------------------
# Pure-JAX reference (lax.conv) for validation
# ----------------------------------------------------------------------------
def _conv(x, w, stride, padding, dilation=1):
    return jax.lax.conv_general_dilated(
        x, w, (stride, stride), ((padding, padding), (padding, padding)),
        rhs_dilation=(dilation, dilation),
        dimension_numbers=("NCHW", "OIHW", "NCHW"))


def _bn(x, bn, eps=1e-5):
    gamma, beta, mean, var = bn
    s = gamma / jnp.sqrt(var + eps)
    b = beta - mean * s
    return x * s[None, :, None, None] + b[None, :, None, None]


def bottleneck_ref(x, p, *, stride, dilation):
    y = jax.nn.relu(_bn(_conv(x, p["w1"], 1, 0), p["bn1"]))
    y = jax.nn.relu(_bn(_conv(y, p["w2"], stride, dilation, dilation), p["bn2"]))
    y = _bn(_conv(y, p["w3"], 1, 0), p["bn3"])
    if p.get("wd") is not None:
        skip = _bn(_conv(x, p["wd"], stride, 0), p["bnd"])
    else:
        skip = x
    return jax.nn.relu(y + skip)


# ----------------------------------------------------------------------------
# Deterministic parameter init (shapes dictated by Bottleneck.__init__)
# ----------------------------------------------------------------------------
def init_params(key, in_planes, planes, stride):
    expansion = 4
    ks = list(jax.random.split(key, 20))

    def w(shape):
        return (jax.random.normal(ks.pop(), shape, jnp.float32) * 0.1)

    def bn(c):
        return (jax.random.uniform(ks.pop(), (c,), jnp.float32, 0.5, 1.5),   # gamma
                jax.random.normal(ks.pop(), (c,), jnp.float32) * 0.1,        # beta
                jax.random.normal(ks.pop(), (c,), jnp.float32) * 0.1,        # running_mean
                jax.random.uniform(ks.pop(), (c,), jnp.float32, 0.5, 1.5))   # running_var

    p = {
        "w1": w((planes, in_planes, 1, 1)), "bn1": bn(planes),
        "w2": w((planes, planes, 3, 3)),    "bn2": bn(planes),
        "w3": w((expansion * planes, planes, 1, 1)), "bn3": bn(expansion * planes),
    }
    if stride != 1 or in_planes != planes * expansion:
        p["wd"] = w((expansion * planes, in_planes, 1, 1))
        p["bnd"] = bn(expansion * planes)
    else:
        p["wd"] = None
    return p


def _run_case(key, N, in_planes, planes, H, W, stride, dilation):
    k_x, k_p = jax.random.split(key)
    x = jax.random.normal(k_x, (N, in_planes, H, W), jnp.float32)
    params = init_params(k_p, in_planes, planes, stride)

    fwd = jax.jit(functools.partial(bottleneck_forward, stride=stride,
                                    dilation=dilation))
    out = jax.block_until_ready(fwd(x, params))
    ref = jax.block_until_ready(bottleneck_ref(x, params, stride=stride,
                                               dilation=dilation))

    Ho = (H + 2 * dilation - dilation * 2 - 1) // stride + 1
    assert out.shape == (N, 4 * planes, Ho, Ho), out.shape
    err = float(jnp.max(jnp.abs(out - ref)))
    assert jnp.allclose(out, ref, atol=3e-2, rtol=3e-2), err
    return err


if __name__ == "__main__":
    key = jax.random.PRNGKey(0)
    k1, k2 = jax.random.split(key)

    # Case 1: downsample path (stride=2, in_planes != 4*planes)
    _run_case(k1, N=2, in_planes=8, planes=4, H=16, W=16, stride=2, dilation=1)

    # Case 2: identity-skip path (stride=1, in_planes == 4*planes)
    _run_case(k2, N=2, in_planes=16, planes=4, H=16, W=16, stride=1, dilation=1)

    print("KERNEL_OK")
</pallas_src>

<mosaic_0001>
module attributes {stable_mosaic.version = 11 : i64} {
  func.func @kernel(%arg0: i32, %arg1: memref<512x8xbf16, #tpu.memory_space<vmem>>, %arg2: memref<8x4xbf16, #tpu.memory_space<vmem>>, %arg3: memref<1x4xf32, #tpu.memory_space<vmem>>, %arg4: memref<512x4xbf16, #tpu.memory_space<vmem>>) attributes {dimension_semantics = [#tpu.dimension_semantics<parallel>], iteration_bounds = array<i64: 1>, scalar_prefetch = 0 : i64, scratch_operands = 0 : i64, tpu.core_type = #tpu.core_type<tc>, window_params = [{transform_indices = @transform_0, window_bounds = array<i64: 512, 8>}, {pipeline_mode = #tpu.pipeline_mode<synchronous>, transform_indices = @transform_1, window_bounds = array<i64: 8, 4>}, {pipeline_mode = #tpu.pipeline_mode<synchronous>, transform_indices = @transform_2, window_bounds = array<i64: 1, 4>}, {transform_indices = @transform_3, window_bounds = array<i64: 512, 4>}]} {
    %c0 = arith.constant 0 : index
    %c0_0 = arith.constant 0 : index
    %0 = vector.load %arg1[%c0, %c0_0] : memref<512x8xbf16, #tpu.memory_space<vmem>>, vector<512x8xbf16>
    %c0_1 = arith.constant 0 : index
    %c0_2 = arith.constant 0 : index
    %1 = vector.load %arg2[%c0_1, %c0_2] : memref<8x4xbf16, #tpu.memory_space<vmem>>, vector<8x4xbf16>
    %cst = arith.constant dense<0.000000e+00> : vector<512x4xf32>
    %2 = tpu.matmul %0, %1, %cst {dimension_numbers = #tpu.dot_dimension_numbers<[1], [0], [0], [1], [0, 0, 1, 1], [], []>} : vector<512x8xbf16>, vector<8x4xbf16>, vector<512x4xf32> -> vector<512x4xf32>
    %c0_3 = arith.constant 0 : index
    %c0_4 = arith.constant 0 : index
    %3 = vector.load %arg3[%c0_3, %c0_4] : memref<1x4xf32, #tpu.memory_space<vmem>>, vector<1x4xf32>
    %4 = vector.broadcast %3 : vector<1x4xf32> to vector<512x4xf32>
    %5 = arith.addf %2, %4 : vector<512x4xf32>
    %cst_5 = arith.constant 0.000000e+00 : f32
    %6 = vector.broadcast %cst_5 : f32 to vector<512x4xf32>
    %7 = arith.maximumf %5, %6 : vector<512x4xf32>
    %8 = arith.truncf %7 : vector<512x4xf32> to vector<512x4xbf16>
    %c0_6 = arith.constant 0 : index
    %c0_7 = arith.constant 0 : index
    %9 = vector.load %arg4[%c0_6, %c0_7] : memref<512x4xbf16, #tpu.memory_space<vmem>>, vector<512x4xbf16>
    tpu.vector_store %arg4[%c0_6, %c0_7], %8 {strides = array<i32>} : memref<512x4xbf16, #tpu.memory_space<vmem>>, vector<512x4xbf16>,
    return
  }
  func.func @transform_0(%arg0: i32) -> (i32, i32) {
    %c0_i32 = arith.constant 0 : i32
    %c0_i32_0 = arith.constant 0 : i32
    return %arg0, %c0_i32 : i32, i32
  }
  func.func @transform_1(%arg0: i32) -> (i32, i32) {
    %c0_i32 = arith.constant 0 : i32
    %c0_i32_0 = arith.constant 0 : i32
    %c0_i32_1 = arith.constant 0 : i32
    return %c0_i32, %c0_i32_0 : i32, i32
  }
  func.func @transform_2(%arg0: i32) -> (i32, i32) {
    %c0_i32 = arith.constant 0 : i32
    %c0_i32_0 = arith.constant 0 : i32
    %c0_i32_1 = arith.constant 0 : i32
    return %c0_i32, %c0_i32_0 : i32, i32
  }
  func.func @transform_3(%arg0: i32) -> (i32, i32) {
    %c0_i32 = arith.constant 0 : i32
    %c0_i32_0 = arith.constant 0 : i32
    return %arg0, %c0_i32 : i32, i32
  }
}

module attributes {stable_mosaic.version = 11 : i64} {
  func.func @kernel(%arg0: i32, %arg1: memref<128x4xbf16, #tpu.memory_space<vmem>>, %arg2: memref<4x16xbf16, #tpu.memory_space<vmem>>, %arg3: memref<1x16xf32, #tpu.memory_space<vmem>>, %arg4: memref<128x8xbf16, #tpu.memory_space<vmem>>, %arg5: memref<8x16xbf16, #tpu.memory_space<vmem>>, %arg6: memref<1x16xf32, #tpu.memory_space<vmem>>, %arg7: memref<128x16xf32, #tpu.memory_space<vmem>>) attributes {dimension_semantics = [#tpu.dimension_semantics<parallel>], iteration_bounds = array<i64: 1>, scalar_prefetch = 0 : i64, scratch_operands = 0 : i64, tpu.core_type = #tpu.core_type<tc>, window_params = [{transform_indices = @transform_0, window_bounds = array<i64: 128, 4>}, {pipeline_mode = #tpu.pipeline_mode<synchronous>, transform_indices = @transform_1, window_bounds = array<i64: 4, 16>}, {pipeline_mode = #tpu.pipeline_mode<synchronous>, transform_indices = @transform_2, window_bounds = array<i64: 1, 16>}, {transform_indices = @transform_3, window_bounds = array<i64: 128, 8>}, {pipeline_mode = #tpu.pipeline_mode<synchronous>, transform_indices = @transform_4, window_bounds = array<i64: 8, 16>}, {pipeline_mode = #tpu.pipeline_mode<synchronous>, transform_indices = @transform_5, window_bounds = array<i64: 1, 16>}, {transform_indices = @transform_6, window_bounds = array<i64: 128, 16>}]} {
    %c0 = arith.constant 0 : index
    %c0_0 = arith.constant 0 : index
    %0 = vector.load %arg1[%c0, %c0_0] : memref<128x4xbf16, #tpu.memory_space<vmem>>, vector<128x4xbf16>
    %c0_1 = arith.constant 0 : index
    %c0_2 = arith.constant 0 : index
    %1 = vector.load %arg2[%c0_1, %c0_2] : memref<4x16xbf16, #tpu.memory_space<vmem>>, vector<4x16xbf16>
    %cst = arith.constant dense<0.000000e+00> : vector<128x16xf32>
    %2 = tpu.matmul %0, %1, %cst {dimension_numbers = #tpu.dot_dimension_numbers<[1], [0], [0], [1], [0, 0, 1, 1], [], []>} : vector<128x4xbf16>, vector<4x16xbf16>, vector<128x16xf32> -> vector<128x16xf32>
    %c0_3 = arith.constant 0 : index
    %c0_4 = arith.constant 0 : index
    %3 = vector.load %arg3[%c0_3, %c0_4] : memref<1x16xf32, #tpu.memory_space<vmem>>, vector<1x16xf32>
    %4 = vector.broadcast %3 : vector<1x16xf32> to vector<128x16xf32>
    %5 = arith.addf %2, %4 : vector<128x16xf32>
    %c0_5 = arith.constant 0 : index
    %c0_6 = arith.constant 0 : index
    %6 = vector.load %arg4[%c0_5, %c0_6] : memref<128x8xbf16, #tpu.memory_space<vmem>>, vector<128x8xbf16>
    %c0_7 = arith.constant 0 : index
    %c0_8 = arith.constant 0 : index
    %7 = vector.load %arg5[%c0_7, %c0_8] : memref<8x16xbf16, #tpu.memory_space<vmem>>, vector<8x16xbf16>
    %cst_9 = arith.constant dense<0.000000e+00> : vector<128x16xf32>
    %8 = tpu.matmul %6, %7, %cst_9 {dimension_numbers = #tpu.dot_dimension_numbers<[1], [0], [0], [1], [0, 0, 1, 1], [], []>} : vector<128x8xbf16>, vector<8x16xbf16>, vector<128x16xf32> -> vector<128x16xf32>
    %9 = arith.addf %5, %8 : vector<128x16xf32>
    %c0_10 = arith.constant 0 : index
    %c0_11 = arith.constant 0 : index
    %10 = vector.load %arg6[%c0_10, %c0_11] : memref<1x16xf32, #tpu.memory_space<vmem>>, vector<1x16xf32>
    %11 = vector.broadcast %10 : vector<1x16xf32> to vector<128x16xf32>
    %12 = arith.addf %9, %11 : vector<128x16xf32>
    %cst_12 = arith.constant 0.000000e+00 : f32
    %13 = vector.broadcast %cst_12 : f32 to vector<128x16xf32>
    %14 = arith.maximumf %12, %13 : vector<128x16xf32>
    %c0_13 = arith.constant 0 : index
    %c0_14 = arith.constant 0 : index
    %15 = vector.load %arg7[%c0_13, %c0_14] : memref<128x16xf32, #tpu.memory_space<vmem>>, vector<128x16xf32>
    tpu.vector_store %arg7[%c0_13, %c0_14], %14 {strides = array<i32>} : memref<128x16xf32, #tpu.memory_space<vmem>>, vector<128x16xf32>,
    return
  }
  func.func @transform_0(%arg0: i32) -> (i32, i32) {
    %c0_i32 = arith.constant 0 : i32
    %c0_i32_0 = arith.constant 0 : i32
    return %arg0, %c0_i32 : i32, i32
  }
  func.func @transform_1(%arg0: i32) -> (i32, i32) {
    %c0_i32 = arith.constant 0 : i32
    %c0_i32_0 = arith.constant 0 : i32
    %c0_i32_1 = arith.constant 0 : i32
    return %c0_i32, %c0_i32_0 : i32, i32
  }
  func.func @transform_2(%arg0: i32) -> (i32, i32) {
    %c0_i32 = arith.constant 0 : i32
    %c0_i32_0 = arith.constant 0 : i32
    %c0_i32_1 = arith.constant 0 : i32
    return %c0_i32, %c0_i32_0 : i32, i32
  }
  func.func @transform_3(%arg0: i32) -> (i32, i32) {
    %c0_i32 = arith.constant 0 : i32
    %c0_i32_0 = arith.constant 0 : i32
    return %arg0, %c0_i32 : i32, i32
  }
  func.func @transform_4(%arg0: i32) -> (i32, i32) {
    %c0_i32 = arith.constant 0 : i32
    %c0_i32_0 = arith.constant 0 : i32
    %c0_i32_1 = arith.constant 0 : i32
    return %c0_i32, %c0_i32_0 : i32, i32
  }
  func.func @transform_5(%arg0: i32) -> (i32, i32) {
    %c0_i32 = arith.constant 0 : i32
    %c0_i32_0 = arith.constant 0 : i32
    %c0_i32_1 = arith.constant 0 : i32
    return %c0_i32, %c0_i32_0 : i32, i32
  }
  func.func @transform_6(%arg0: i32) -> (i32, i32) {
    %c0_i32 = arith.constant 0 : i32
    %c0_i32_0 = arith.constant 0 : i32
    return %arg0, %c0_i32 : i32, i32
  }
}

module attributes {stable_mosaic.version = 11 : i64} {
  func.func @kernel(%arg0: i32, %arg1: memref<128x36xbf16, #tpu.memory_space<vmem>>, %arg2: memref<36x4xbf16, #tpu.memory_space<vmem>>, %arg3: memref<1x4xf32, #tpu.memory_space<vmem>>, %arg4: memref<128x4xbf16, #tpu.memory_space<vmem>>) attributes {dimension_semantics = [#tpu.dimension_semantics<parallel>], iteration_bounds = array<i64: 1>, scalar_prefetch = 0 : i64, scratch_operands = 0 : i64, tpu.core_type = #tpu.core_type<tc>, window_params = [{transform_indices = @transform_0, window_bounds = array<i64: 128, 36>}, {pipeline_mode = #tpu.pipeline_mode<synchronous>, transform_indices = @transform_1, window_bounds = array<i64: 36, 4>}, {pipeline_mode = #tpu.pipeline_mode<synchronous>, transform_indices = @transform_2, window_bounds = array<i64: 1, 4>}, {transform_indices = @transform_3, window_bounds = array<i64: 128, 4>}]} {
    %c0 = arith.constant 0 : index
    %c0_0 = arith.constant 0 : index
    %0 = vector.load %arg1[%c0, %c0_0] : memref<128x36xbf16, #tpu.memory_space<vmem>>, vector<128x36xbf16>
    %c0_1 = arith.constant 0 : index
    %c0_2 = arith.constant 0 : index
    %1 = vector.load %arg2[%c0_1, %c0_2] : memref<36x4xbf16, #tpu.memory_space<vmem>>, vector<36x4xbf16>
    %cst = arith.constant dense<0.000000e+00> : vector<128x4xf32>
    %2 = tpu.matmul %0, %1, %cst {dimension_numbers = #tpu.dot_dimension_numbers<[1], [0], [0], [1], [0, 0, 1, 1], [], []>} : vector<128x36xbf16>, vector<36x4xbf16>, vector<128x4xf32> -> vector<128x4xf32>
    %c0_3 = arith.constant 0 : index
    %c0_4 = arith.constant 0 : index
    %3 = vector.load %arg3[%c0_3, %c0_4] : memref<1x4xf32, #tpu.memory_space<vmem>>, vector<1x4xf32>
    %4 = vector.broadcast %3 : vector<1x4xf32> to vector<128x4xf32>
    %5 = arith.addf %2, %4 : vector<128x4xf32>
    %cst_5 = arith.constant 0.000000e+00 : f32
    %6 = vector.broadcast %cst_5 : f32 to vector<128x4xf32>
    %7 = arith.maximumf %5, %6 : vector<128x4xf32>
    %8 = arith.truncf %7 : vector<128x4xf32> to vector<128x4xbf16>
    %c0_6 = arith.constant 0 : index
    %c0_7 = arith.constant 0 : index
    %9 = vector.load %arg4[%c0_6, %c0_7] : memref<128x4xbf16, #tpu.memory_space<vmem>>, vector<128x4xbf16>
    tpu.vector_store %arg4[%c0_6, %c0_7], %8 {strides = array<i32>} : memref<128x4xbf16, #tpu.memory_space<vmem>>, vector<128x4xbf16>,
    return
  }
  func.func @transform_0(%arg0: i32) -> (i32, i32) {
    %c0_i32 = arith.constant 0 : i32
    %c0_i32_0 = arith.constant 0 : i32
    return %arg0, %c0_i32 : i32, i32
  }
  func.func @transform_1(%arg0: i32) -> (i32, i32) {
    %c0_i32 = arith.constant 0 : i32
    %c0_i32_0 = arith.constant 0 : i32
    %c0_i32_1 = arith.constant 0 : i32
    return %c0_i32, %c0_i32_0 : i32, i32
  }
  func.func @transform_2(%arg0: i32) -> (i32, i32) {
    %c0_i32 = arith.constant 0 : i32
    %c0_i32_0 = arith.constant 0 : i32
    %c0_i32_1 = arith.constant 0 : i32
    return %c0_i32, %c0_i32_0 : i32, i32
  }
  func.func @transform_3(%arg0: i32) -> (i32, i32) {
    %c0_i32 = arith.constant 0 : i32
    %c0_i32_0 = arith.constant 0 : i32
    return %arg0, %c0_i32 : i32, i32
  }
}

</mosaic_0001>

<llo_original>
// kernel: bottleneck_forward.5
$region0: #{bottleneck_forward.5}
  #allocation0 [shape = 'u32[]', space=smem, size = 0x4, offset = 0x4, fixed_abs, tag = 'smem constant byte address 0x4 - core index']
  #allocation1 [shape = 'u32[144,128]{1,0:T(1,128)}', space=vmem, size = 0x12000, scoped, tag = 'internal scratch']
  %s0 = inlined_call_operand.vmem [shape: bf16[128,4], index: 0, kind: input, shape index: {}]
  %s1 = inlined_call_operand.vmem [shape: bf16[4,16], index: 1, kind: input, shape index: {}]
  %s2 = inlined_call_operand.vmem [shape: f32[1,16], index: 2, kind: input, shape index: {}]
  %s3 = inlined_call_operand.vmem [shape: bf16[128,8], index: 3, kind: input, shape index: {}]
  %s4 = inlined_call_operand.vmem [shape: bf16[8,16], index: 4, kind: input, shape index: {}]
  %s5 = inlined_call_operand.vmem [shape: f32[1,16], index: 5, kind: input, shape index: {}]
  %s6 = inlined_call_operand.hbm [shape: f32[128,16], index: 6, kind: output, shape index: {}]
  %s7 = sld [smem:[#allocation0]]
  $region34: #{bottleneck_forward.5} parent=0
    _
  %s9 = ssub.s32 1, %s7
  %s10 = scalar_select 0, %s9, %s7
  $region1: #{bottleneck_forward.5} parent=0
    #allocation2 [shape = 'u8[65536]{0}', space=vmem, size = 0x10000, scoped, tag = 'output window, operand 0, single buffered']
    #allocation3 [shape = 's32[1]{0}', space=sflag, size = 0x4, scoped, tag = 'scoped memory for bottleneck_forward.5']
    %11 = vsyncpa [#allocation3], 0
    // Predicated region
    $region2: #{bottleneck_forward.5} parent=1 // pred_check
      _
    $region3: #{bottleneck_forward.5} parent=1 // pred_check_branch
      %13 = sbr.rel (0) target = $region5
    $region4: #{bottleneck_forward.5} parent=1 // pred_region
      _
    $region5: #{bottleneck_forward.5} parent=1 // pred_fallthru
      _
    // Predicated region
    $region6: #{bottleneck_forward.5} parent=1 // pred_check
      _
    $region7: #{bottleneck_forward.5} parent=1 // pred_check_branch
      %15 = sbr.rel (0) target = $region9
    $region8: #{bottleneck_forward.5} parent=1 // pred_region
      _
    $region9: #{bottleneck_forward.5} parent=1 // pred_fallthru
      _
    // Predicated region
    $region10: #{bottleneck_forward.5} parent=1 // pred_check
      _
    $region11: #{bottleneck_forward.5} parent=1 // pred_check_branch
      %17 = sbr.rel (0) target = $region13
    $region12: #{bottleneck_forward.5} parent=1 // pred_region
      _
    $region13: #{bottleneck_forward.5} parent=1 // pred_fallthru
      _
    // Predicated region
    $region14: #{bottleneck_forward.5} parent=1 // pred_check
      _
    $region15: #{bottleneck_forward.5} parent=1 // pred_check_branch
      %19 = sbr.rel (0) target = $region17
    $region16: #{bottleneck_forward.5} parent=1 // pred_region
      _
    $region17: #{bottleneck_forward.5} parent=1 // pred_fallthru
      _
    // Predicated region
    $region18: #{bottleneck_forward.5} parent=1 // pred_check
      _
    $region19: #{bottleneck_forward.5} parent=1 // pred_check_branch
      %21 = sbr.rel (0) target = $region21
    $region20: #{bottleneck_forward.5} parent=1 // pred_region
      _
    $region21: #{bottleneck_forward.5} parent=1 // pred_fallthru
      _
    // Predicated region
    $region22: #{bottleneck_forward.5} parent=1 // pred_check
      _
    $region23: #{bottleneck_forward.5} parent=1 // pred_check_branch
      %23 = sbr.rel (0) target = $region25
    $region24: #{bottleneck_forward.5} parent=1 // pred_region
      _
    $region25: #{bottleneck_forward.5} parent=1 // pred_fallthru
      _
    %v25 = vld [vmem:[%s0] sm:$0xf]
    %v26 = vld [vmem:[%s0 + $0x4] sm:$0xf]
    %v27 = vld [vmem:[%s0 + $0x8] sm:$0xf]
    %v28 = vld [vmem:[%s0 + $0xc] sm:$0xf]
    %v29 = vld [vmem:[%s0 + $0x10] sm:$0xf]
    %v30 = vld [vmem:[%s0 + $0x14] sm:$0xf]
    %v31 = vld [vmem:[%s0 + $0x18] sm:$0xf]
    %v32 = vld [vmem:[%s0 + $0x1c] sm:$0xf]
    %v33 = vld [vmem:[%s0 + $0x20] sm:$0xf]
    %v34 = vld [vmem:[%s0 + $0x24] sm:$0xf]
    %v35 = vld [vmem:[%s0 + $0x28] sm:$0xf]
    %v36 = vld [vmem:[%s0 + $0x2c] sm:$0xf]
    %v37 = vld [vmem:[%s0 + $0x30] sm:$0xf]
    %v38 = vld [vmem:[%s0 + $0x34] sm:$0xf]
    %v39 = vld [vmem:[%s0 + $0x38] sm:$0xf]
    %v40 = vld [vmem:[%s0 + $0x3c] sm:$0xf]
    %v41 = vld [vmem:[%s1] sm:$0x3]
    %v42 = vld [vmem:[%s2] sm:$0x1]
    %v44 = vlaneseq
    %v45 = vshrl.u32 %v44, 7
    %v46 = vsub.s32 0, %v45
    %v47 = vrot.slane %v42, %v46
    %v65 = vunpack.c.l.b16 %v25
    %v66 = vunpack.c.l.b16 %v26
    %v67 = vunpack.c.l.b16 %v27
    %v68 = vunpack.c.l.b16 %v28
    %v69 = vunpack.c.l.b16 %v29
    %v70 = vunpack.c.l.b16 %v30
    %v71 = vunpack.c.l.b16 %v31
    %v72 = vunpack.c.l.b16 %v32
    %v73 = vunpack.c.l.b16 %v33
    %v74 = vunpack.c.l.b16 %v34
    %v75 = vunpack.c.l.b16 %v35
    %v76 = vunpack.c.l.b16 %v36
    %v77 = vunpack.c.l.b16 %v37
    %v78 = vunpack.c.l.b16 %v38
    %v79 = vunpack.c.l.b16 %v39
    %v80 = vunpack.c.l.b16 %v40
    %v81 = vpack.c.b16 %v66, %v65
    %v82 = vpack.c.b16 %v68, %v67
    %v83 = vpack.c.b16 %v70, %v69
    %v84 = vpack.c.b16 %v72, %v71
    %v85 = vpack.c.b16 %v74, %v73
    %v86 = vpack.c.b16 %v76, %v75
    %v87 = vpack.c.b16 %v78, %v77
    %v88 = vpack.c.b16 %v80, %v79
    %vm89 = vcmask 31744
    %v91 = vsel %vm89, %v81, 0
    %v94 = vsel %vm89, %v82, 0
    %v97 = vsel %vm89, %v83, 0
    %v100 = vsel %vm89, %v84, 0
    %v103 = vsel %vm89, %v85, 0
    %v106 = vsel %vm89, %v86, 0
    %v109 = vsel %vm89, %v87, 0
    %v112 = vsel %vm89, %v88, 0
    %vm114 = vcmask 1041408
    %v116 = vsel %vm114, %v41, 0
    %118 = vmatprep.subr.bf16.mxu0 0
    %119 = vmatpush1.bf16.msra.mxu0 0
    %120 = vmatprep.subr.bf16.mxu0 0
    %121 = vmatpush1.bf16.msra.mxu0 0
    %122 = vmatprep.subr.bf16.mxu0 0
    %123 = vmatpush1.bf16.msra.mxu0 0
    %124 = vmatprep.subr.bf16.mxu0 0
    %125 = vmatpush1.bf16.msra.mxu0 0
    %126 = vmatprep.subr.bf16.mxu0 0
    %127 = vmatpush1.bf16.msra.mxu0 0
    %128 = vmatprep.subr.bf16.mxu0 0
    %129 = vmatpush1.bf16.msra.mxu0 0
    %130 = vmatprep.subr.bf16.mxu0 0
    %131 = vmatpush1.bf16.msra.mxu0 0
    %132 = vmatprep.subr.bf16.mxu0 0
    %133 = vmatpush1.bf16.msra.mxu0 %v116
    %134 = vmatprep.subr.bf16.mxu0 0
    %135 = vmatpush2.bf16.msra.mxu0 0
    %136 = vmatprep.subr.bf16.mxu0 0
    %137 = vmatpush2.bf16.msra.mxu0 0
    %138 = vmatprep.subr.bf16.mxu0 0
    %139 = vmatpush2.bf16.msra.mxu0 0
    %140 = vmatprep.subr.bf16.mxu0 0
    %141 = vmatpush2.bf16.msra.mxu0 0
    %142 = vmatprep.subr.bf16.mxu0 0
    %143 = vmatpush2.bf16.msra.mxu0 0
    %144 = vmatprep.subr.bf16.mxu0 0
    %145 = vmatpush2.bf16.msra.mxu0 0
    %146 = vmatprep.subr.bf16.mxu0 0
    %147 = vmatpush2.bf16.msra.mxu0 0
    %148 = vmatprep.subr.bf16.mxu0 0
    %149 = vmatpush2.bf16.msra.mxu0 0
    %150 = vmatprep.mubr.bf16.mxu0 0
    %151 = vmatmul.mubr.bf16.gmra.mxu0 %v91
    %v152 = vpop.f32.mrf.mxu0
    %v153 = vadd.f32 %v47, %v152
    %v154 = vpop.f32.mrf.mxu0
    %v155 = vpop.f32.mrf.mxu0
    %v156 = vadd.f32 %v47, %v155
    %v157 = vpop.f32.mrf.mxu0
    %158 = vmatprep.mubr.bf16.mxu0 0
    %159 = vmatmul.mubr.bf16.gmra.mxu0 %v94
    %v160 = vpop.f32.mrf.mxu0
    %v161 = vadd.f32 %v47, %v160
    %v162 = vpop.f32.mrf.mxu0
    %v163 = vpop.f32.mrf.mxu0
    %v164 = vadd.f32 %v47, %v163
    %v165 = vpop.f32.mrf.mxu0
    %166 = vmatprep.mubr.bf16.mxu0 0
    %167 = vmatmul.mubr.bf16.gmra.mxu0 %v97
    %v168 = vpop.f32.mrf.mxu0
    %v169 = vadd.f32 %v47, %v168
    %v170 = vpop.f32.mrf.mxu0
    %v171 = vpop.f32.mrf.mxu0
    %v172 = vadd.f32 %v47, %v171
    %v173 = vpop.f32.mrf.mxu0
    %174 = vmatprep.mubr.bf16.mxu0 0
    %175 = vmatmul.mubr.bf16.gmra.mxu0 %v100
    %v176 = vpop.f32.mrf.mxu0
    %v177 = vadd.f32 %v47, %v176
    %v178 = vpop.f32.mrf.mxu0
    %v179 = vpop.f32.mrf.mxu0
    %v180 = vadd.f32 %v47, %v179
    %v181 = vpop.f32.mrf.mxu0
    %182 = vmatprep.mubr.bf16.mxu0 0
    %183 = vmatmul.mubr.bf16.gmra.mxu0 %v103
    %v184 = vpop.f32.mrf.mxu0
    %v185 = vadd.f32 %v47, %v184
    %v186 = vpop.f32.mrf.mxu0
    %v187 = vpop.f32.mrf.mxu0
    %v188 = vadd.f32 %v47, %v187
    %v189 = vpop.f32.mrf.mxu0
    %190 = vmatprep.mubr.bf16.mxu0 0
    %191 = vmatmul.mubr.bf16.gmra.mxu0 %v106
    %v192 = vpop.f32.mrf.mxu0
    %v193 = vadd.f32 %v47, %v192
    %v194 = vpop.f32.mrf.mxu0
    %v195 = vpop.f32.mrf.mxu0
    %v196 = vadd.f32 %v47, %v195
    %v197 = vpop.f32.mrf.mxu0
    %198 = vmatprep.mubr.bf16.mxu0 0
    %199 = vmatmul.mubr.bf16.gmra.mxu0 %v109
    %v200 = vpop.f32.mrf.mxu0
    %v201 = vadd.f32 %v47, %v200
    %v202 = vpop.f32.mrf.mxu0
    %v203 = vpop.f32.mrf.mxu0
    %v204 = vadd.f32 %v47, %v203
    %v205 = vpop.f32.mrf.mxu0
    %206 = vmatprep.mubr.bf16.mxu0 0
    %207 = vmatmul.mubr.bf16.gmra.mxu0 %v112
    %v208 = vpop.f32.mrf.mxu0
    %v209 = vadd.f32 %v47, %v208
    %v210 = vpop.f32.mrf.mxu0
    %v211 = vpop.f32.mrf.mxu0
    %v212 = vadd.f32 %v47, %v211
    %v213 = vpop.f32.mrf.mxu0
    %214 = vdwg.mxu0
    %v215 = vld [vmem:[%s3] sm:$0xf]
    %v216 = vld [vmem:[%s3 + $0x4] sm:$0xf]
    %v217 = vld [vmem:[%s3 + $0x8] sm:$0xf]
    %v218 = vld [vmem:[%s3 + $0xc] sm:$0xf]
    %v219 = vld [vmem:[%s3 + $0x10] sm:$0xf]
    %v220 = vld [vmem:[%s3 + $0x14] sm:$0xf]
    %v221 = vld [vmem:[%s3 + $0x18] sm:$0xf]
    %v222 = vld [vmem:[%s3 + $0x1c] sm:$0xf]
    %v223 = vld [vmem:[%s3 + $0x20] sm:$0xf]
    %v224 = vld [vmem:[%s3 + $0x24] sm:$0xf]
    %v225 = vld [vmem:[%s3 + $0x28] sm:$0xf]
    %v226 = vld [vmem:[%s3 + $0x2c] sm:$0xf]
    %v227 = vld [vmem:[%s3 + $0x30] sm:$0xf]
    %v228 = vld [vmem:[%s3 + $0x34] sm:$0xf]
    %v229 = vld [vmem:[%s3 + $0x38] sm:$0xf]
    %v230 = vld [vmem:[%s3 + $0x3c] sm:$0xf]
    %v231 = vld [vmem:[%s4] sm:$0xf]
    %v248 = vunpack.c.l.b16 %v215
    %v249 = vunpack.c.l.b16 %v216
    %v250 = vunpack.c.l.b16 %v217
    %v251 = vunpack.c.l.b16 %v218
    %v252 = vunpack.c.l.b16 %v219
    %v253 = vunpack.c.l.b16 %v220
    %v254 = vunpack.c.l.b16 %v221
    %v255 = vunpack.c.l.b16 %v222
    %v256 = vunpack.c.l.b16 %v223
    %v257 = vunpack.c.l.b16 %v224
    %v258 = vunpack.c.l.b16 %v225
    %v259 = vunpack.c.l.b16 %v226
    %v260 = vunpack.c.l.b16 %v227
    %v261 = vunpack.c.l.b16 %v228
    %v262 = vunpack.c.l.b16 %v229
    %v263 = vunpack.c.l.b16 %v230
    %v264 = vpack.c.b16 %v249, %v248
    %v265 = vpack.c.b16 %v251, %v250
    %v266 = vpack.c.b16 %v253, %v252
    %v267 = vpack.c.b16 %v255, %v254
    %v268 = vpack.c.b16 %v257, %v256
    %v269 = vpack.c.b16 %v259, %v258
    %v270 = vpack.c.b16 %v261, %v260
    %v271 = vpack.c.b16 %v263, %v262
    %vm272 = vcmask 64512
    %v274 = vsel %vm272, %v264, 0
    %v277 = vsel %vm272, %v265, 0
    %v280 = vsel %vm272, %v266, 0
    %v283 = vsel %vm272, %v267, 0
    %v286 = vsel %vm272, %v268, 0
    %v289 = vsel %vm272, %v269, 0
    %v292 = vsel %vm272, %v270, 0
    %v295 = vsel %vm272, %v271, 0
    %vm297 = vcmask 1043456
    %v299 = vsel %vm297, %v231, 0
    %301 = vmatprep.subr.bf16.mxu0 0
    %302 = vmatpush1.bf16.msra.mxu0 0
    %303 = vmatprep.subr.bf16.mxu0 0
    %304 = vmatpush1.bf16.msra.mxu0 0
    %305 = vmatprep.subr.bf16.mxu0 0
    %306 = vmatpush1.bf16.msra.mxu0 0
    %307 = vmatprep.subr.bf16.mxu0 0
    %308 = vmatpush1.bf16.msra.mxu0 0
    %309 = vmatprep.subr.bf16.mxu0 0
    %310 = vmatpush1.bf16.msra.mxu0 0
    %311 = vmatprep.subr.bf16.mxu0 0
    %312 = vmatpush1.bf16.msra.mxu0 0
    %313 = vmatprep.subr.bf16.mxu0 0
    %314 = vmatpush1.bf16.msra.mxu0 0
    %315 = vmatprep.subr.bf16.mxu0 0
    %316 = vmatpush1.bf16.msra.mxu0 %v299
    %317 = vmatprep.subr.bf16.mxu0 0
    %318 = vmatpush2.bf16.msra.mxu0 0
    %319 = vmatprep.subr.bf16.mxu0 0
    %320 = vmatpush2.bf16.msra.mxu0 0
    %321 = vmatprep.subr.bf16.mxu0 0
    %322 = vmatpush2.bf16.msra.mxu0 0
    %323 = vmatprep.subr.bf16.mxu0 0
    %324 = vmatpush2.bf16.msra.mxu0 0
    %325 = vmatprep.subr.bf16.mxu0 0
    %326 = vmatpush2.bf16.msra.mxu0 0
    %327 = vmatprep.subr.bf16.mxu0 0
    %328 = vmatpush2.bf16.msra.mxu0 0
    %329 = vmatprep.subr.bf16.mxu0 0
    %330 = vmatpush2.bf16.msra.mxu0 0
    %331 = vmatprep.subr.bf16.mxu0 0
    %332 = vmatpush2.bf16.msra.mxu0 0
    %333 = vmatprep.mubr.bf16.mxu0 0
    %334 = vmatmul.mubr.bf16.gmra.mxu0 %v274
    %v335 = vpop.f32.mrf.mxu0
    %v336 = vadd.f32 0.0, %v335
    %v337 = vpop.f32.mrf.mxu0
    %v338 = vpop.f32.mrf.mxu0
    %v339 = vadd.f32 0.0, %v338
    %v340 = vpop.f32.mrf.mxu0
    %341 = vmatprep.mubr.bf16.mxu0 0
    %342 = vmatmul.mubr.bf16.gmra.mxu0 %v277
    %v343 = vpop.f32.mrf.mxu0
    %v344 = vadd.f32 0.0, %v343
    %v345 = vpop.f32.mrf.mxu0
    %v346 = vpop.f32.mrf.mxu0
    %v347 = vadd.f32 0.0, %v346
    %v348 = vpop.f32.mrf.mxu0
    %349 = vmatprep.mubr.bf16.mxu0 0
    %350 = vmatmul.mubr.bf16.gmra.mxu0 %v280
    %v351 = vpop.f32.mrf.mxu0
    %v352 = vadd.f32 0.0, %v351
    %v353 = vpop.f32.mrf.mxu0
    %v354 = vpop.f32.mrf.mxu0
    %v355 = vadd.f32 0.0, %v354
    %v356 = vpop.f32.mrf.mxu0
    %357 = vmatprep.mubr.bf16.mxu0 0
    %358 = vmatmul.mubr.bf16.gmra.mxu0 %v283
    %v359 = vpop.f32.mrf.mxu0
    %v360 = vadd.f32 0.0, %v359
    %v361 = vpop.f32.mrf.mxu0
    %v362 = vpop.f32.mrf.mxu0
    %v363 = vadd.f32 0.0, %v362
    %v364 = vpop.f32.mrf.mxu0
    %365 = vmatprep.mubr.bf16.mxu0 0
    %366 = vmatmul.mubr.bf16.gmra.mxu0 %v286
    %v367 = vpop.f32.mrf.mxu0
    %v368 = vadd.f32 0.0, %v367
    %v369 = vpop.f32.mrf.mxu0
    %v370 = vpop.f32.mrf.mxu0
    %v371 = vadd.f32 0.0, %v370
    %v372 = vpop.f32.mrf.mxu0
    %373 = vmatprep.mubr.bf16.mxu0 0
    %374 = vmatmul.mubr.bf16.gmra.mxu0 %v289
    %v375 = vpop.f32.mrf.mxu0
    %v376 = vadd.f32 0.0, %v375
    %v377 = vpop.f32.mrf.mxu0
    %v378 = vpop.f32.mrf.mxu0
    %v379 = vadd.f32 0.0, %v378
    %v380 = vpop.f32.mrf.mxu0
    %381 = vmatprep.mubr.bf16.mxu0 0
    %382 = vmatmul.mubr.bf16.gmra.mxu0 %v292
    %v383 = vpop.f32.mrf.mxu0
    %v384 = vadd.f32 0.0, %v383
    %v385 = vpop.f32.mrf.mxu0
    %v386 = vpop.f32.mrf.mxu0
    %v387 = vadd.f32 0.0, %v386
    %v388 = vpop.f32.mrf.mxu0
    %389 = vmatprep.mubr.bf16.mxu0 0
    %390 = vmatmul.mubr.bf16.gmra.mxu0 %v295
    %v391 = vpop.f32.mrf.mxu0
    %v392 = vadd.f32 0.0, %v391
    %v393 = vpop.f32.mrf.mxu0
    %v394 = vpop.f32.mrf.mxu0
    %v395 = vadd.f32 0.0, %v394
    %v396 = vpop.f32.mrf.mxu0
    %397 = vdwg.mxu0
    %v398 = vadd.f32 %v153, %v336
    %v399 = vadd.f32 %v156, %v339
    %v400 = vadd.f32 %v161, %v344
    %v401 = vadd.f32 %v164, %v347
    %v402 = vadd.f32 %v169, %v352
    %v403 = vadd.f32 %v172, %v355
    %v404 = vadd.f32 %v177, %v360
    %v405 = vadd.f32 %v180, %v363
    %v406 = vadd.f32 %v185, %v368
    %v407 = vadd.f32 %v188, %v371
    %v408 = vadd.f32 %v193, %v376
    %v409 = vadd.f32 %v196, %v379
    %v410 = vadd.f32 %v201, %v384
    %v411 = vadd.f32 %v204, %v387
    %v412 = vadd.f32 %v209, %v392
    %v413 = vadd.f32 %v212, %v395
    %v414 = vld [vmem:[%s5] sm:$0x1]
    %v416 = vlaneseq
    %v417 = vshrl.u32 %v416, 7
    %v418 = vsub.s32 0, %v417
    %v419 = vrot.slane %v414, %v418
    %v421 = vadd.f32 %v398, %v419
    %v422 = vadd.f32 %v399, %v419
    %v423 = vadd.f32 %v400, %v419
    %v424 = vadd.f32 %v401, %v419
    %v425 = vadd.f32 %v402, %v419
    %v426 = vadd.f32 %v403, %v419
    %v427 = vadd.f32 %v404, %v419
    %v428 = vadd.f32 %v405, %v419
    %v429 = vadd.f32 %v406, %v419
    %v430 = vadd.f32 %v407, %v419
    %v431 = vadd.f32 %v408, %v419
    %v432 = vadd.f32 %v409, %v419
    %v433 = vadd.f32 %v410, %v419
    %v434 = vadd.f32 %v411, %v419
    %v435 = vadd.f32 %v412, %v419
    %v436 = vadd.f32 %v413, %v419
    %v437 = vmax.f32 %v421, 0.0
    %v438 = vmax.f32 %v422, 0.0
    %v439 = vmax.f32 %v423, 0.0
    %v440 = vmax.f32 %v424, 0.0
    %v441 = vmax.f32 %v425, 0.0
    %v442 = vmax.f32 %v426, 0.0
    %v443 = vmax.f32 %v427, 0.0
    %v444 = vmax.f32 %v428, 0.0
    %v445 = vmax.f32 %v429, 0.0
    %v446 = vmax.f32 %v430, 0.0
    %v447 = vmax.f32 %v431, 0.0
    %v448 = vmax.f32 %v432, 0.0
    %v449 = vmax.f32 %v433, 0.0
    %v450 = vmax.f32 %v434, 0.0
    %v451 = vmax.f32 %v435, 0.0
    %v452 = vmax.f32 %v436, 0.0
    %vm453 = vcmask 130048
    %454 = vst.msk [vmem:[#allocation2] sm:$0xff] %vm453, %v437
    %455 = vst.msk [vmem:[#allocation2 + $0x8] sm:$0xff] %vm453, %v438
    %456 = vst.msk [vmem:[#allocation2 + $0x10] sm:$0xff] %vm453, %v439
    %457 = vst.msk [vmem:[#allocation2 + $0x18] sm:$0xff] %vm453, %v440
    %458 = vst.msk [vmem:[#allocation2 + $0x20] sm:$0xff] %vm453, %v441
    %459 = vst.msk [vmem:[#allocation2 + $0x28] sm:$0xff] %vm453, %v442
    %460 = vst.msk [vmem:[#allocation2 + $0x30] sm:$0xff] %vm453, %v443
    %461 = vst.msk [vmem:[#allocation2 + $0x38] sm:$0xff] %vm453, %v444
    %462 = vst.msk [vmem:[#allocation2 + $0x40] sm:$0xff] %vm453, %v445
    %463 = vst.msk [vmem:[#allocation2 + $0x48] sm:$0xff] %vm453, %v446
    %464 = vst.msk [vmem:[#allocation2 + $0x50] sm:$0xff] %vm453, %v447
    %465 = vst.msk [vmem:[#allocation2 + $0x58] sm:$0xff] %vm453, %v448
    %466 = vst.msk [vmem:[#allocation2 + $0x60] sm:$0xff] %vm453, %v449
    %467 = vst.msk [vmem:[#allocation2 + $0x68] sm:$0xff] %vm453, %v450
    %468 = vst.msk [vmem:[#allocation2 + $0x70] sm:$0xff] %vm453, %v451
    %469 = vst.msk [vmem:[#allocation2 + $0x78] sm:$0xff] %vm453, %v452
    // Predicated region
    $region26: #{bottleneck_forward.5} parent=1 // pred_check
      _
    $region27: #{bottleneck_forward.5} parent=1 // pred_check_branch
      %471 = sbr.rel (0) target = $region29
    $region28: #{bottleneck_forward.5} parent=1 // pred_region
      %s473 = ssub.s32 2048, 2048
      %474 = vsyncadd [#allocation3], %s473
      %s475 = sshll.u32 [#allocation2], 4
      %s476 = int_to_ptr.vmem [resolvable:$true] %s475
      %481 = dma.vmem_to_hbm [thread:$0]  %s476, 2048, %s6, [#allocation3], 128, 128, 8
    $region29: #{bottleneck_forward.5} parent=1 // pred_fallthru
      _
    // Predicated region
    $region30: #{bottleneck_forward.5} parent=1 // pred_check
      _
    $region31: #{bottleneck_forward.5} parent=1 // pred_check_branch
      %483 = sbr.rel (0) target = $region33
    $region32: #{bottleneck_forward.5} parent=1 // pred_region
      %484 = dma.done [#allocation3], 2048
    $region33: #{bottleneck_forward.5} parent=1 // pred_fallthru
      _
    %485 = vsyncpa [#allocation3], 1

// kernel: bottleneck_forward.4
$region0: #{bottleneck_forward.4}
  #allocation0 [shape = 'u32[]', space=smem, size = 0x4, offset = 0x4, fixed_abs, tag = 'smem constant byte address 0x4 - core index']
  #allocation1 [shape = 'u32[144,128]{1,0:T(1,128)}', space=vmem, size = 0x12000, scoped, tag = 'internal scratch']
  %s0 = inlined_call_operand.vmem [shape: bf16[128,36], index: 0, kind: input, shape index: {}]
  %s1 = inlined_call_operand.vmem [shape: bf16[36,4], index: 1, kind: input, shape index: {}]
  %s2 = inlined_call_operand.vmem [shape: f32[1,4], index: 2, kind: input, shape index: {}]
  %s3 = inlined_call_operand.vmem [shape: bf16[128,4], index: 3, kind: output, shape index: {}]
  %s4 = sld [smem:[#allocation0]]
  $region22: #{bottleneck_forward.4} parent=0
    _
  %s6 = ssub.s32 1, %s4
  %s7 = scalar_select 0, %s6, %s4
  // Predicated region
  $region2: #{bottleneck_forward.4} parent=0 // pred_check
    _
  $region3: #{bottleneck_forward.4} parent=0 // pred_check_branch
    %9 = sbr.rel (0) target = $region5
  $region4: #{bottleneck_forward.4} parent=0 // pred_region
    _
  $region5: #{bottleneck_forward.4} parent=0 // pred_fallthru
    _
  // Predicated region
  $region6: #{bottleneck_forward.4} parent=0 // pred_check
    _
  $region7: #{bottleneck_forward.4} parent=0 // pred_check_branch
    %11 = sbr.rel (0) target = $region9
  $region8: #{bottleneck_forward.4} parent=0 // pred_region
    _
  $region9: #{bottleneck_forward.4} parent=0 // pred_fallthru
    _
  // Predicated region
  $region10: #{bottleneck_forward.4} parent=0 // pred_check
    _
  $region11: #{bottleneck_forward.4} parent=0 // pred_check_branch
    %13 = sbr.rel (0) target = $region13
  $region12: #{bottleneck_forward.4} parent=0 // pred_region
    _
  $region13: #{bottleneck_forward.4} parent=0 // pred_fallthru
    _
  %v15 = vld [vmem:[%s0] sm:$0xf]
  %v16 = vld [vmem:[%s0 + $0x4] sm:$0xf]
  %v17 = vld [vmem:[%s0 + $0x8] sm:$0xf]
  %v18 = vld [vmem:[%s0 + $0xc] sm:$0xf]
  %v19 = vld [vmem:[%s0 + $0x10] sm:$0xf]
  %v20 = vld [vmem:[%s0 + $0x14] sm:$0xf]
  %v21 = vld [vmem:[%s0 + $0x18] sm:$0xf]
  %v22 = vld [vmem:[%s0 + $0x1c] sm:$0xf]
  %v23 = vld [vmem:[%s0 + $0x20] sm:$0xf]
  %v24 = vld [vmem:[%s0 + $0x24] sm:$0xf]
  %v25 = vld [vmem:[%s0 + $0x28] sm:$0xf]
  %v26 = vld [vmem:[%s0 + $0x2c] sm:$0xf]
  %v27 = vld [vmem:[%s0 + $0x30] sm:$0xf]
  %v28 = vld [vmem:[%s0 + $0x34] sm:$0xf]
  %v29 = vld [vmem:[%s0 + $0x38] sm:$0xf]
  %v30 = vld [vmem:[%s0 + $0x3c] sm:$0xf]
  %v31 = vld [vmem:[%s1] sm:$0xf]
  %v32 = vld [vmem:[%s1 + $0x4] sm:$0xf]
  %v33 = vld [vmem:[%s1 + $0x8] sm:$0xf]
  %v34 = vld [vmem:[%s1 + $0xc] sm:$0xf]
  %v35 = vld [vmem:[%s1 + $0x10] sm:$0x3]
  %v36 = vld [vmem:[%s2] sm:$0x1]
  %v38 = vlaneseq
  %v39 = vshrl.u32 %v38, 7
  %v40 = vsub.s32 0, %v39
  %v41 = vrot.slane %v36, %v40
  %v59 = vunpack.c.l.b16 %v15
  %v60 = vunpack.c.l.b16 %v16
  %v61 = vunpack.c.l.b16 %v17
  %v62 = vunpack.c.l.b16 %v18
  %v63 = vunpack.c.l.b16 %v19
  %v64 = vunpack.c.l.b16 %v20
  %v65 = vunpack.c.l.b16 %v21
  %v66 = vunpack.c.l.b16 %v22
  %v67 = vunpack.c.l.b16 %v23
  %v68 = vunpack.c.l.b16 %v24
  %v69 = vunpack.c.l.b16 %v25
  %v70 = vunpack.c.l.b16 %v26
  %v71 = vunpack.c.l.b16 %v27
  %v72 = vunpack.c.l.b16 %v28
  %v73 = vunpack.c.l.b16 %v29
  %v74 = vunpack.c.l.b16 %v30
  %v75 = vpack.c.b16 %v60, %v59
  %v76 = vpack.c.b16 %v62, %v61
  %v77 = vpack.c.b16 %v64, %v63
  %v78 = vpack.c.b16 %v66, %v65
  %v79 = vpack.c.b16 %v68, %v67
  %v80 = vpack.c.b16 %v70, %v69
  %v81 = vpack.c.b16 %v72, %v71
  %v82 = vpack.c.b16 %v74, %v73
  %v88 = vunpack.c.l.b16 %v31
  %v89 = vunpack.c.l.b16 %v32
  %v90 = vunpack.c.l.b16 %v33
  %v91 = vunpack.c.l.b16 %v34
  %v92 = vunpack.c.l.b16 %v35
  %v93 = vpack.c.b16 %v89, %v88
  %v94 = vpack.c.b16 %v91, %v90
  %v95 = vpack.c.b16 %v92, %v92
  %vm98 = vcmask 293888
  %v100 = vsel %vm98, %v75, 0
  %v103 = vsel %vm98, %v76, 0
  %v106 = vsel %vm98, %v77, 0
  %v109 = vsel %vm98, %v78, 0
  %v112 = vsel %vm98, %v79, 0
  %v115 = vsel %vm98, %v80, 0
  %v118 = vsel %vm98, %v81, 0
  %v121 = vsel %vm98, %v82, 0
  %vm123 = vcmask 1041408
  %v125 = vsel %vm123, %v95, 0
  %127 = vmatprep.subr.bf16.mxu0 0
  %128 = vmatpush1.bf16.msra.mxu0 0
  %129 = vmatprep.subr.bf16.mxu0 0
  %130 = vmatpush1.bf16.msra.mxu0 0
  %131 = vmatprep.subr.bf16.mxu0 0
  %132 = vmatpush1.bf16.msra.mxu0 0
  %133 = vmatprep.subr.bf16.mxu0 0
  %134 = vmatpush1.bf16.msra.mxu0 0
  %135 = vmatprep.subr.bf16.mxu0 0
  %136 = vmatpush1.bf16.msra.mxu0 0
  %137 = vmatprep.subr.bf16.mxu0 0
  %138 = vmatpush1.bf16.msra.mxu0 %v125
  %139 = vmatprep.subr.bf16.mxu0 0
  %140 = vmatpush1.bf16.msra.mxu0 %v94
  %141 = vmatprep.subr.bf16.mxu0 0
  %142 = vmatpush1.bf16.msra.mxu0 %v93
  %143 = vmatprep.subr.bf16.mxu0 0
  %144 = vmatpush2.bf16.msra.mxu0 0
  %145 = vmatprep.subr.bf16.mxu0 0
  %146 = vmatpush2.bf16.msra.mxu0 0
  %147 = vmatprep.subr.bf16.mxu0 0
  %148 = vmatpush2.bf16.msra.mxu0 0
  %149 = vmatprep.subr.bf16.mxu0 0
  %150 = vmatpush2.bf16.msra.mxu0 0
  %151 = vmatprep.subr.bf16.mxu0 0
  %152 = vmatpush2.bf16.msra.mxu0 0
  %153 = vmatprep.subr.bf16.mxu0 0
  %154 = vmatpush2.bf16.msra.mxu0 0
  %155 = vmatprep.subr.bf16.mxu0 0
  %156 = vmatpush2.bf16.msra.mxu0 0
  %157 = vmatprep.subr.bf16.mxu0 0
  %158 = vmatpush2.bf16.msra.mxu0 0
  %159 = vmatprep.mubr.bf16.mxu0 0
  %160 = vmatmul.mubr.bf16.gmra.mxu0 %v100
  %v161 = vpop.f32.mrf.mxu0
  %v162 = vadd.f32 %v41, %v161
  %v163 = vpop.f32.mrf.mxu0
  %v164 = vpop.f32.mrf.mxu0
  %v165 = vadd.f32 %v41, %v164
  %v166 = vpop.f32.mrf.mxu0
  %167 = vmatprep.mubr.bf16.mxu0 0
  %168 = vmatmul.mubr.bf16.gmra.mxu0 %v103
  %v169 = vpop.f32.mrf.mxu0
  %v170 = vadd.f32 %v41, %v169
  %v171 = vpop.f32.mrf.mxu0
  %v172 = vpop.f32.mrf.mxu0
  %v173 = vadd.f32 %v41, %v172
  %v174 = vpop.f32.mrf.mxu0
  %175 = vmatprep.mubr.bf16.mxu0 0
  %176 = vmatmul.mubr.bf16.gmra.mxu0 %v106
  %v177 = vpop.f32.mrf.mxu0
  %v178 = vadd.f32 %v41, %v177
  %v179 = vpop.f32.mrf.mxu0
  %v180 = vpop.f32.mrf.mxu0
  %v181 = vadd.f32 %v41, %v180
  %v182 = vpop.f32.mrf.mxu0
  %183 = vmatprep.mubr.bf16.mxu0 0
  %184 = vmatmul.mubr.bf16.gmra.mxu0 %v109
  %v185 = vpop.f32.mrf.mxu0
  %v186 = vadd.f32 %v41, %v185
  %v187 = vpop.f32.mrf.mxu0
  %v188 = vpop.f32.mrf.mxu0
  %v189 = vadd.f32 %v41, %v188
  %v190 = vpop.f32.mrf.mxu0
  %191 = vmatprep.mubr.bf16.mxu0 0
  %192 = vmatmul.mubr.bf16.gmra.mxu0 %v112
  %v193 = vpop.f32.mrf.mxu0
  %v194 = vadd.f32 %v41, %v193
  %v195 = vpop.f32.mrf.mxu0
  %v196 = vpop.f32.mrf.mxu0
  %v197 = vadd.f32 %v41, %v196
  %v198 = vpop.f32.mrf.mxu0
  %199 = vmatprep.mubr.bf16.mxu0 0
  %200 = vmatmul.mubr.bf16.gmra.mxu0 %v115
  %v201 = vpop.f32.mrf.mxu0
  %v202 = vadd.f32 %v41, %v201
  %v203 = vpop.f32.mrf.mxu0
  %v204 = vpop.f32.mrf.mxu0
  %v205 = vadd.f32 %v41, %v204
  %v206 = vpop.f32.mrf.mxu0
  %207 = vmatprep.mubr.bf16.mxu0 0
  %208 = vmatmul.mubr.bf16.gmra.mxu0 %v118
  %v209 = vpop.f32.mrf.mxu0
  %v210 = vadd.f32 %v41, %v209
  %v211 = vpop.f32.mrf.mxu0
  %v212 = vpop.f32.mrf.mxu0
  %v213 = vadd.f32 %v41, %v212
  %v214 = vpop.f32.mrf.mxu0
  %215 = vmatprep.mubr.bf16.mxu0 0
  %216 = vmatmul.mubr.bf16.gmra.mxu0 %v121
  %v217 = vpop.f32.mrf.mxu0
  %v218 = vadd.f32 %v41, %v217
  %v219 = vpop.f32.mrf.mxu0
  %v220 = vpop.f32.mrf.mxu0
  %v221 = vadd.f32 %v41, %v220
  %v222 = vpop.f32.mrf.mxu0
  %223 = vdwg.mxu0
  %v224 = vmax.f32 %v162, 0.0
  %v225 = vmax.f32 %v165, 0.0
  %v226 = vmax.f32 %v170, 0.0
  %v227 = vmax.f32 %v173, 0.0
  %v228 = vmax.f32 %v178, 0.0
  %v229 = vmax.f32 %v181, 0.0
  %v230 = vmax.f32 %v186, 0.0
  %v231 = vmax.f32 %v189, 0.0
  %v232 = vmax.f32 %v194, 0.0
  %v233 = vmax.f32 %v197, 0.0
  %v234 = vmax.f32 %v202, 0.0
  %v235 = vmax.f32 %v205, 0.0
  %v236 = vmax.f32 %v210, 0.0
  %v237 = vmax.f32 %v213, 0.0
  %v238 = vmax.f32 %v218, 0.0
  %v239 = vmax.f32 %v221, 0.0
  %v240 = vpack.c.bf16 %v225, %v224
  %v241 = vpack.c.bf16 %v227, %v226
  %v242 = vpack.c.bf16 %v229, %v228
  %v243 = vpack.c.bf16 %v231, %v230
  %v244 = vpack.c.bf16 %v233, %v232
  %v245 = vpack.c.bf16 %v235, %v234
  %v246 = vpack.c.bf16 %v237, %v236
  %v247 = vpack.c.bf16 %v239, %v238
  %v256 = vunpack.c.l.b16 %v240
  %v257 = vunpack.c.h.b16 %v240
  %v258 = vunpack.c.l.b16 %v241
  %v259 = vunpack.c.h.b16 %v241
  %v260 = vunpack.c.l.b16 %v242
  %v261 = vunpack.c.h.b16 %v242
  %v262 = vunpack.c.l.b16 %v243
  %v263 = vunpack.c.h.b16 %v243
  %v264 = vunpack.c.l.b16 %v244
  %v265 = vunpack.c.h.b16 %v244
  %v266 = vunpack.c.l.b16 %v245
  %v267 = vunpack.c.h.b16 %v245
  %v268 = vunpack.c.l.b16 %v246
  %v269 = vunpack.c.h.b16 %v246
  %v270 = vunpack.c.l.b16 %v247
  %v271 = vunpack.c.h.b16 %v247
  %v272 = vpack.c.b16 %v256, %v256
  %v273 = vpack.c.b16 %v257, %v257
  %v274 = vpack.c.b16 %v258, %v258
  %v275 = vpack.c.b16 %v259, %v259
  %v276 = vpack.c.b16 %v260, %v260
  %v277 = vpack.c.b16 %v261, %v261
  %v278 = vpack.c.b16 %v262, %v262
  %v279 = vpack.c.b16 %v263, %v263
  %v280 = vpack.c.b16 %v264, %v264
  %v281 = vpack.c.b16 %v265, %v265
  %v282 = vpack.c.b16 %v266, %v266
  %v283 = vpack.c.b16 %v267, %v267
  %v284 = vpack.c.b16 %v268, %v268
  %v285 = vpack.c.b16 %v269, %v269
  %v286 = vpack.c.b16 %v270, %v270
  %v287 = vpack.c.b16 %v271, %v271
  %vm304 = vcmask 27648
  %305 = vst.msk [vmem:[%s3] sm:$0xf] %vm304, %v272
  %306 = vst.msk [vmem:[%s3 + $0x4] sm:$0xf] %vm304, %v273
  %307 = vst.msk [vmem:[%s3 + $0x8] sm:$0xf] %vm304, %v274
  %308 = vst.msk [vmem:[%s3 + $0xc] sm:$0xf] %vm304, %v275
  %309 = vst.msk [vmem:[%s3 + $0x10] sm:$0xf] %vm304, %v276
  %310 = vst.msk [vmem:[%s3 + $0x14] sm:$0xf] %vm304, %v277
  %311 = vst.msk [vmem:[%s3 + $0x18] sm:$0xf] %vm304, %v278
  %312 = vst.msk [vmem:[%s3 + $0x1c] sm:$0xf] %vm304, %v279
  %313 = vst.msk [vmem:[%s3 + $0x20] sm:$0xf] %vm304, %v280
  %314 = vst.msk [vmem:[%s3 + $0x24] sm:$0xf] %vm304, %v281
  %315 = vst.msk [vmem:[%s3 + $0x28] sm:$0xf] %vm304, %v282
  %316 = vst.msk [vmem:[%s3 + $0x2c] sm:$0xf] %vm304, %v283
  %317 = vst.msk [vmem:[%s3 + $0x30] sm:$0xf] %vm304, %v284
  %318 = vst.msk [vmem:[%s3 + $0x34] sm:$0xf] %vm304, %v285
  %319 = vst.msk [vmem:[%s3 + $0x38] sm:$0xf] %vm304, %v286
  %320 = vst.msk [vmem:[%s3 + $0x3c] sm:$0xf] %vm304, %v287
  // Predicated region
  $region14: #{bottleneck_forward.4} parent=0 // pred_check
    _
  $region15: #{bottleneck_forward.4} parent=0 // pred_check_branch
    %322 = sbr.rel (0) target = $region17
  $region16: #{bottleneck_forward.4} parent=0 // pred_region
    _
  $region17: #{bottleneck_forward.4} parent=0 // pred_fallthru
    _
  // Predicated region
  $region18: #{bottleneck_forward.4} parent=0 // pred_check
    _
  $region19: #{bottleneck_forward.4} parent=0 // pred_check_branch
    %324 = sbr.rel (0) target = $region21
  $region20: #{bottleneck_forward.4} parent=0 // pred_region
    _
  $region21: #{bottleneck_forward.4} parent=0 // pred_fallthru
    _

// kernel: bottleneck_forward.3
$region0: #{bottleneck_forward.3}
  #allocation0 [shape = 'u32[]', space=smem, size = 0x4, offset = 0x4, fixed_abs, tag = 'smem constant byte address 0x4 - core index']
  #allocation1 [shape = 'u32[144,128]{1,0:T(1,128)}', space=vmem, size = 0x12000, scoped, tag = 'internal scratch']
  %s0 = inlined_call_operand.vmem [shape: bf16[512,8], index: 0, kind: input, shape index: {}]
  %s1 = inlined_call_operand.vmem [shape: bf16[8,4], index: 1, kind: input, shape index: {}]
  %s2 = inlined_call_operand.vmem [shape: f32[1,4], index: 2, kind: input, shape index: {}]
  %s3 = inlined_call_operand.vmem [shape: bf16[512,4], index: 3, kind: output, shape index: {}]
  %s4 = sld [smem:[#allocation0]]
  $region22: #{bottleneck_forward.3} parent=0
    _
  %s6 = ssub.s32 1, %s4
  %s7 = scalar_select 0, %s6, %s4
  // Predicated region
  $region2: #{bottleneck_forward.3} parent=0 // pred_check
    _
  $region3: #{bottleneck_forward.3} parent=0 // pred_check_branch
    %9 = sbr.rel (0) target = $region5
  $region4: #{bottleneck_forward.3} parent=0 // pred_region
    _
  $region5: #{bottleneck_forward.3} parent=0 // pred_fallthru
    _
  // Predicated region
  $region6: #{bottleneck_forward.3} parent=0 // pred_check
    _
  $region7: #{bottleneck_forward.3} parent=0 // pred_check_branch
    %11 = sbr.rel (0) target = $region9
  $region8: #{bottleneck_forward.3} parent=0 // pred_region
    _
  $region9: #{bottleneck_forward.3} parent=0 // pred_fallthru
    _
  // Predicated region
  $region10: #{bottleneck_forward.3} parent=0 // pred_check
    _
  $region11: #{bottleneck_forward.3} parent=0 // pred_check_branch
    %13 = sbr.rel (0) target = $region13
  $region12: #{bottleneck_forward.3} parent=0 // pred_region
    _
  $region13: #{bottleneck_forward.3} parent=0 // pred_fallthru
    _
  %v15 = vld [vmem:[%s0] sm:$0xf]
  %v16 = vld [vmem:[%s0 + $0x4] sm:$0xf]
  %v17 = vld [vmem:[%s0 + $0x8] sm:$0xf]
  %v18 = vld [vmem:[%s0 + $0xc] sm:$0xf]
  %v19 = vld [vmem:[%s0 + $0x10] sm:$0xf]
  %v20 = vld [vmem:[%s0 + $0x14] sm:$0xf]
  %v21 = vld [vmem:[%s0 + $0x18] sm:$0xf]
  %v22 = vld [vmem:[%s0 + $0x1c] sm:$0xf]
  %v23 = vld [vmem:[%s0 + $0x20] sm:$0xf]
  %v24 = vld [vmem:[%s0 + $0x24] sm:$0xf]
  %v25 = vld [vmem:[%s0 + $0x28] sm:$0xf]
  %v26 = vld [vmem:[%s0 + $0x2c] sm:$0xf]
  %v27 = vld [vmem:[%s0 + $0x30] sm:$0xf]
  %v28 = vld [vmem:[%s0 + $0x34] sm:$0xf]
  %v29 = vld [vmem:[%s0 + $0x38] sm:$0xf]
  %v30 = vld [vmem:[%s0 + $0x3c] sm:$0xf]
  %v31 = vld [vmem:[%s0 + $0x40] sm:$0xf]
  %v32 = vld [vmem:[%s0 + $0x44] sm:$0xf]
  %v33 = vld [vmem:[%s0 + $0x48] sm:$0xf]
  %v34 = vld [vmem:[%s0 + $0x4c] sm:$0xf]
  %v35 = vld [vmem:[%s0 + $0x50] sm:$0xf]
  %v36 = vld [vmem:[%s0 + $0x54] sm:$0xf]
  %v37 = vld [vmem:[%s0 + $0x58] sm:$0xf]
  %v38 = vld [vmem:[%s0 + $0x5c] sm:$0xf]
  %v39 = vld [vmem:[%s0 + $0x60] sm:$0xf]
  %v40 = vld [vmem:[%s0 + $0x64] sm:$0xf]
  %v41 = vld [vmem:[%s0 + $0x68] sm:$0xf]
  %v42 = vld [vmem:[%s0 + $0x6c] sm:$0xf]
  %v43 = vld [vmem:[%s0 + $0x70] sm:$0xf]
  %v44 = vld [vmem:[%s0 + $0x74] sm:$0xf]
  %v45 = vld [vmem:[%s0 + $0x78] sm:$0xf]
  %v46 = vld [vmem:[%s0 + $0x7c] sm:$0xf]
  %v47 = vld [vmem:[%s0 + $0x80] sm:$0xf]
  %v48 = vld [vmem:[%s0 + $0x84] sm:$0xf]
  %v49 = vld [vmem:[%s0 + $0x88] sm:$0xf]
  %v50 = vld [vmem:[%s0 + $0x8c] sm:$0xf]
  %v51 = vld [vmem:[%s0 + $0x90] sm:$0xf]
  %v52 = vld [vmem:[%s0 + $0x94] sm:$0xf]
  %v53 = vld [vmem:[%s0 + $0x98] sm:$0xf]
  %v54 = vld [vmem:[%s0 + $0x9c] sm:$0xf]
  %v55 = vld [vmem:[%s0 + $0xa0] sm:$0xf]
  %v56 = vld [vmem:[%s0 + $0xa4] sm:$0xf]
  %v57 = vld [vmem:[%s0 + $0xa8] sm:$0xf]
  %v58 = vld [vmem:[%s0 + $0xac] sm:$0xf]
  %v59 = vld [vmem:[%s0 + $0xb0] sm:$0xf]
  %v60 = vld [vmem:[%s0 + $0xb4] sm:$0xf]
  %v61 = vld [vmem:[%s0 + $0xb8] sm:$0xf]
  %v62 = vld [vmem:[%s0 + $0xbc] sm:$0xf]
  %v63 = vld [vmem:[%s0 + $0xc0] sm:$0xf]
  %v64 = vld [vmem:[%s0 + $0xc4] sm:$0xf]
  %v65 = vld [vmem:[%s0 + $0xc8] sm:$0xf]
  %v66 = vld [vmem:[%s0 + $0xcc] sm:$0xf]
  %v67 = vld [vmem:[%s0 + $0xd0] sm:$0xf]
  %v68 = vld [vmem:[%s0 + $0xd4] sm:$0xf]
  %v69 = vld [vmem:[%s0 + $0xd8] sm:$0xf]
  %v70 = vld [vmem:[%s0 + $0xdc] sm:$0xf]
  %v71 = vld [vmem:[%s0 + $0xe0] sm:$0xf]
  %v72 = vld [vmem:[%s0 + $0xe4] sm:$0xf]
  %v73 = vld [vmem:[%s0 + $0xe8] sm:$0xf]
  %v74 = vld [vmem:[%s0 + $0xec] sm:$0xf]
  %v75 = vld [vmem:[%s0 + $0xf0] sm:$0xf]
  %v76 = vld [vmem:[%s0 + $0xf4] sm:$0xf]
  %v77 = vld [vmem:[%s0 + $0xf8] sm:$0xf]
  %v78 = vld [vmem:[%s0 + $0xfc] sm:$0xf]
  %v79 = vld [vmem:[%s1] sm:$0xf]
  %v80 = vld [vmem:[%s2] sm:$0x1]
  %v82 = vlaneseq
  %v83 = vshrl.u32 %v82, 7
  %v84 = vsub.s32 0, %v83
  %v85 = vrot.slane %v80, %v84
  %v151 = vunpack.c.l.b16 %v15
  %v152 = vunpack.c.l.b16 %v16
  %v153 = vunpack.c.l.b16 %v17
  %v154 = vunpack.c.l.b16 %v18
  %v155 = vunpack.c.l.b16 %v19
  %v156 = vunpack.c.l.b16 %v20
  %v157 = vunpack.c.l.b16 %v21
  %v158 = vunpack.c.l.b16 %v22
  %v159 = vunpack.c.l.b16 %v23
  %v160 = vunpack.c.l.b16 %v24
  %v161 = vunpack.c.l.b16 %v25
  %v162 = vunpack.c.l.b16 %v26
  %v163 = vunpack.c.l.b16 %v27
  %v164 = vunpack.c.l.b16 %v28
  %v165 = vunpack.c.l.b16 %v29
  %v166 = vunpack.c.l.b16 %v30
  %v167 = vunpack.c.l.b16 %v31
  %v168 = vunpack.c.l.b16 %v32
  %v169 = vunpack.c.l.b16 %v33
  %v170 = vunpack.c.l.b16 %v34
  %v171 = vunpack.c.l.b16 %v35
  %v172 = vunpack.c.l.b16 %v36
  %v173 = vunpack.c.l.b16 %v37
  %v174 = vunpack.c.l.b16 %v38
  %v175 = vunpack.c.l.b16 %v39
  %v176 = vunpack.c.l.b16 %v40
  %v177 = vunpack.c.l.b16 %v41
  %v178 = vunpack.c.l.b16 %v42
  %v179 = vunpack.c.l.b16 %v43
  %v180 = vunpack.c.l.b16 %v44
  %v181 = vunpack.c.l.b16 %v45
  %v182 = vunpack.c.l.b16 %v46
  %v183 = vunpack.c.l.b16 %v47
  %v184 = vunpack.c.l.b16 %v48
  %v185 = vunpack.c.l.b16 %v49
  %v186 = vunpack.c.l.b16 %v50
  %v187 = vunpack.c.l.b16 %v51
  %v188 = vunpack.c.l.b16 %v52
  %v189 = vunpack.c.l.b16 %v53
  %v190 = vunpack.c.l.b16 %v54
  %v191 = vunpack.c.l.b16 %v55
  %v192 = vunpack.c.l.b16 %v56
  %v193 = vunpack.c.l.b16 %v57
  %v194 = vunpack.c.l.b16 %v58
  %v195 = vunpack.c.l.b16 %v59
  %v196 = vunpack.c.l.b16 %v60
  %v197 = vunpack.c.l.b16 %v61
  %v198 = vunpack.c.l.b16 %v62
  %v199 = vunpack.c.l.b16 %v63
  %v200 = vunpack.c.l.b16 %v64
  %v201 = vunpack.c.l.b16 %v65
  %v202 = vunpack.c.l.b16 %v66
  %v203 = vunpack.c.l.b16 %v67
  %v204 = vunpack.c.l.b16 %v68
  %v205 = vunpack.c.l.b16 %v69
  %v206 = vunpack.c.l.b16 %v70
  %v207 = vunpack.c.l.b16 %v71
  %v208 = vunpack.c.l.b16 %v72
  %v209 = vunpack.c.l.b16 %v73
  %v210 = vunpack.c.l.b16 %v74
  %v211 = vunpack.c.l.b16 %v75
  %v212 = vunpack.c.l.b16 %v76
  %v213 = vunpack.c.l.b16 %v77
  %v214 = vunpack.c.l.b16 %v78
  %v215 = vpack.c.b16 %v152, %v151
  %v216 = vpack.c.b16 %v154, %v153
  %v217 = vpack.c.b16 %v156, %v155
  %v218 = vpack.c.b16 %v158, %v157
  %v219 = vpack.c.b16 %v160, %v159
  %v220 = vpack.c.b16 %v162, %v161
  %v221 = vpack.c.b16 %v164, %v163
  %v222 = vpack.c.b16 %v166, %v165
  %v223 = vpack.c.b16 %v168, %v167
  %v224 = vpack.c.b16 %v170, %v169
  %v225 = vpack.c.b16 %v172, %v171
  %v226 = vpack.c.b16 %v174, %v173
  %v227 = vpack.c.b16 %v176, %v175
  %v228 = vpack.c.b16 %v178, %v177
  %v229 = vpack.c.b16 %v180, %v179
  %v230 = vpack.c.b16 %v182, %v181
  %v231 = vpack.c.b16 %v184, %v183
  %v232 = vpack.c.b16 %v186, %v185
  %v233 = vpack.c.b16 %v188, %v187
  %v234 = vpack.c.b16 %v190, %v189
  %v235 = vpack.c.b16 %v192, %v191
  %v236 = vpack.c.b16 %v194, %v193
  %v237 = vpack.c.b16 %v196, %v195
  %v238 = vpack.c.b16 %v198, %v197
  %v239 = vpack.c.b16 %v200, %v199
  %v240 = vpack.c.b16 %v202, %v201
  %v241 = vpack.c.b16 %v204, %v203
  %v242 = vpack.c.b16 %v206, %v205
  %v243 = vpack.c.b16 %v208, %v207
  %v244 = vpack.c.b16 %v210, %v209
  %v245 = vpack.c.b16 %v212, %v211
  %v246 = vpack.c.b16 %v214, %v213
  %vm247 = vcmask 64512
  %v249 = vsel %vm247, %v215, 0
  %v252 = vsel %vm247, %v216, 0
  %v255 = vsel %vm247, %v217, 0
  %v258 = vsel %vm247, %v218, 0
  %v261 = vsel %vm247, %v219, 0
  %v264 = vsel %vm247, %v220, 0
  %v267 = vsel %vm247, %v221, 0
  %v270 = vsel %vm247, %v222, 0
  %v273 = vsel %vm247, %v223, 0
  %v276 = vsel %vm247, %v224, 0
  %v279 = vsel %vm247, %v225, 0
  %v282 = vsel %vm247, %v226, 0
  %v285 = vsel %vm247, %v227, 0
  %v288 = vsel %vm247, %v228, 0
  %v291 = vsel %vm247, %v229, 0
  %v294 = vsel %vm247, %v230, 0
  %v297 = vsel %vm247, %v231, 0
  %v300 = vsel %vm247, %v232, 0
  %v303 = vsel %vm247, %v233, 0
  %v306 = vsel %vm247, %v234, 0
  %v309 = vsel %vm247, %v235, 0
  %v312 = vsel %vm247, %v236, 0
  %v315 = vsel %vm247, %v237, 0
  %v318 = vsel %vm247, %v238, 0
  %v321 = vsel %vm247, %v239, 0
  %v324 = vsel %vm247, %v240, 0
  %v327 = vsel %vm247, %v241, 0
  %v330 = vsel %vm247, %v242, 0
  %v333 = vsel %vm247, %v243, 0
  %v336 = vsel %vm247, %v244, 0
  %v339 = vsel %vm247, %v245, 0
  %v342 = vsel %vm247, %v246, 0
  %vm344 = vcmask 1043456
  %v346 = vsel %vm344, %v79, 0
  %348 = vmatprep.subr.bf16.mxu0 0
  %349 = vmatpush1.bf16.msra.mxu0 0
  %350 = vmatprep.subr.bf16.mxu0 0
  %351 = vmatpush1.bf16.msra.mxu0 0
  %352 = vmatprep.subr.bf16.mxu0 0
  %353 = vmatpush1.bf16.msra.mxu0 0
  %354 = vmatprep.subr.bf16.mxu0 0
  %355 = vmatpush1.bf16.msra.mxu0 0
  %356 = vmatprep.subr.bf16.mxu0 0
  %357 = vmatpush1.bf16.msra.mxu0 0
  %358 = vmatprep.subr.bf16.mxu0 0
  %359 = vmatpush1.bf16.msra.mxu0 0
  %360 = vmatprep.subr.bf16.mxu0 0
  %361 = vmatpush1.bf16.msra.mxu0 0
  %362 = vmatprep.subr.bf16.mxu0 0
  %363 = vmatpush1.bf16.msra.mxu0 %v346
  %364 = vmatprep.subr.bf16.mxu0 0
  %365 = vmatpush2.bf16.msra.mxu0 0
  %366 = vmatprep.subr.bf16.mxu0 0
  %367 = vmatpush2.bf16.msra.mxu0 0
  %368 = vmatprep.subr.bf16.mxu0 0
  %369 = vmatpush2.bf16.msra.mxu0 0
  %370 = vmatprep.subr.bf16.mxu0 0
  %371 = vmatpush2.bf16.msra.mxu0 0
  %372 = vmatprep.subr.bf16.mxu0 0
  %373 = vmatpush2.bf16.msra.mxu0 0
  %374 = vmatprep.subr.bf16.mxu0 0
  %375 = vmatpush2.bf16.msra.mxu0 0
  %376 = vmatprep.subr.bf16.mxu0 0
  %377 = vmatpush2.bf16.msra.mxu0 0
  %378 = vmatprep.subr.bf16.mxu0 0
  %379 = vmatpush2.bf16.msra.mxu0 0
  %380 = vmatprep.mubr.bf16.mxu0 0
  %381 = vmatmul.mubr.bf16.gmra.mxu0 %v249
  %v382 = vpop.f32.mrf.mxu0
  %v383 = vadd.f32 %v85, %v382
  %v384 = vpop.f32.mrf.mxu0
  %v385 = vpop.f32.mrf.mxu0
  %v386 = vadd.f32 %v85, %v385
  %v387 = vpop.f32.mrf.mxu0
  %388 = vmatprep.mubr.bf16.mxu0 0
  %389 = vmatmul.mubr.bf16.gmra.mxu0 %v252
  %v390 = vpop.f32.mrf.mxu0
  %v391 = vadd.f32 %v85, %v390
  %v392 = vpop.f32.mrf.mxu0
  %v393 = vpop.f32.mrf.mxu0
  %v394 = vadd.f32 %v85, %v393
  %v395 = vpop.f32.mrf.mxu0
  %396 = vmatprep.mubr.bf16.mxu0 0
  %397 = vmatmul.mubr.bf16.gmra.mxu0 %v255
  %v398 = vpop.f32.mrf.mxu0
  %v399 = vadd.f32 %v85, %v398
  %v400 = vpop.f32.mrf.mxu0
  %v401 = vpop.f32.mrf.mxu0
  %v402 = vadd.f32 %v85, %v401
  %v403 = vpop.f32.mrf.mxu0
  %404 = vmatprep.mubr.bf16.mxu0 0
  %405 = vmatmul.mubr.bf16.gmra.mxu0 %v258
  %v406 = vpop.f32.mrf.mxu0
  %v407 = vadd.f32 %v85, %v406
  %v408 = vpop.f32.mrf.mxu0
  %v409 = vpop.f32.mrf.mxu0
  %v410 = vadd.f32 %v85, %v409
  %v411 = vpop.f32.mrf.mxu0
  %412 = vmatprep.mubr.bf16.mxu0 0
  %413 = vmatmul.mubr.bf16.gmra.mxu0 %v261
  %v414 = vpop.f32.mrf.mxu0
  %v415 = vadd.f32 %v85, %v414
  %v416 = vpop.f32.mrf.mxu0
  %v417 = vpop.f32.mrf.mxu0
  %v418 = vadd.f32 %v85, %v417
  %v419 = vpop.f32.mrf.mxu0
  %420 = vmatprep.mubr.bf16.mxu0 0
  %421 = vmatmul.mubr.bf16.gmra.mxu0 %v264
  %v422 = vpop.f32.mrf.mxu0
  %v423 = vadd.f32 %v85, %v422
  %v424 = vpop.f32.mrf.mxu0
  %v425 = vpop.f32.mrf.mxu0
  %v426 = vadd.f32 %v85, %v425
  %v427 = vpop.f32.mrf.mxu0
  %428 = vmatprep.mubr.bf16.mxu0 0
  %429 = vmatmul.mubr.bf16.gmra.mxu0 %v267
  %v430 = vpop.f32.mrf.mxu0
  %v431 = vadd.f32 %v85, %v430
  %v432 = vpop.f32.mrf.mxu0
  %v433 = vpop.f32.mrf.mxu0
  %v434 = vadd.f32 %v85, %v433
  %v435 = vpop.f32.mrf.mxu0
  %436 = vmatprep.mubr.bf16.mxu0 0
  %437 = vmatmul.mubr.bf16.gmra.mxu0 %v270
  %v438 = vpop.f32.mrf.mxu0
  %v439 = vadd.f32 %v85, %v438
  %v440 = vpop.f32.mrf.mxu0
  %v441 = vpop.f32.mrf.mxu0
  %v442 = vadd.f32 %v85, %v441
  %v443 = vpop.f32.mrf.mxu0
  %444 = vmatprep.mubr.bf16.mxu0 0
  %445 = vmatmul.mubr.bf16.gmra.mxu0 %v273
  %v446 = vpop.f32.mrf.mxu0
  %v447 = vadd.f32 %v85, %v446
  %v448 = vpop.f32.mrf.mxu0
  %v449 = vpop.f32.mrf.mxu0
  %v450 = vadd.f32 %v85, %v449
  %v451 = vpop.f32.mrf.mxu0
  %452 = vmatprep.mubr.bf16.mxu0 0
  %453 = vmatmul.mubr.bf16.gmra.mxu0 %v276
  %v454 = vpop.f32.mrf.mxu0
  %v455 = vadd.f32 %v85, %v454
  %v456 = vpop.f32.mrf.mxu0
  %v457 = vpop.f32.mrf.mxu0
  %v458 = vadd.f32 %v85, %v457
  %v459 = vpop.f32.mrf.mxu0
  %460 = vmatprep.mubr.bf16.mxu0 0
  %461 = vmatmul.mubr.bf16.gmra.mxu0 %v279
  %v462 = vpop.f32.mrf.mxu0
  %v463 = vadd.f32 %v85, %v462
  %v464 = vpop.f32.mrf.mxu0
  %v465 = vpop.f32.mrf.mxu0
  %v466 = vadd.f32 %v85, %v465
  %v467 = vpop.f32.mrf.mxu0
  %468 = vmatprep.mubr.bf16.mxu0 0
  %469 = vmatmul.mubr.bf16.gmra.mxu0 %v282
  %v470 = vpop.f32.mrf.mxu0
  %v471 = vadd.f32 %v85, %v470
  %v472 = vpop.f32.mrf.mxu0
  %v473 = vpop.f32.mrf.mxu0
  %v474 = vadd.f32 %v85, %v473
  %v475 = vpop.f32.mrf.mxu0
  %476 = vmatprep.mubr.bf16.mxu0 0
  %477 = vmatmul.mubr.bf16.gmra.mxu0 %v285
  %v478 = vpop.f32.mrf.mxu0
  %v479 = vadd.f32 %v85, %v478
  %v480 = vpop.f32.mrf.mxu0
  %v481 = vpop.f32.mrf.mxu0
  %v482 = vadd.f32 %v85, %v481
  %v483 = vpop.f32.mrf.mxu0
  %484 = vmatprep.mubr.bf16.mxu0 0
  %485 = vmatmul.mubr.bf16.gmra.mxu0 %v288
  %v486 = vpop.f32.mrf.mxu0
  %v487 = vadd.f32 %v85, %v486
  %v488 = vpop.f32.mrf.mxu0
  %v489 = vpop.f32.mrf.mxu0
  %v490 = vadd.f32 %v85, %v489
  %v491 = vpop.f32.mrf.mxu0
  %492 = vmatprep.mubr.bf16.mxu0 0
  %493 = vmatmul.mubr.bf16.gmra.mxu0 %v291
  %v494 = vpop.f32.mrf.mxu0
  %v495 = vadd.f32 %v85, %v494
  %v496 = vpop.f32.mrf.mxu0
  %v497 = vpop.f32.mrf.mxu0
  %v498 = vadd.f32 %v85, %v497
  %v499 = vpop.f32.mrf.mxu0
  %500 = vmatprep.mubr.bf16.mxu0 0
  %501 = vmatmul.mubr.bf16.gmra.mxu0 %v294
  %v502 = vpop.f32.mrf.mxu0
  %v503 = vadd.f32 %v85, %v502
  %v504 = vpop.f32.mrf.mxu0
  %v505 = vpop.f32.mrf.mxu0
  %v506 = vadd.f32 %v85, %v505
  %v507 = vpop.f32.mrf.mxu0
  %508 = vmatprep.mubr.bf16.mxu0 0
  %509 = vmatmul.mubr.bf16.gmra.mxu0 %v297
  %v510 = vpop.f32.mrf.mxu0
  %v511 = vadd.f32 %v85, %v510
  %v512 = vpop.f32.mrf.mxu0
  %v513 = vpop.f32.mrf.mxu0
  %v514 = vadd.f32 %v85, %v513
  %v515 = vpop.f32.mrf.mxu0
  %516 = vmatprep.mubr.bf16.mxu0 0
  %517 = vmatmul.mubr.bf16.gmra.mxu0 %v300
  %v518 = vpop.f32.mrf.mxu0
  %v519 = vadd.f32 %v85, %v518
  %v520 = vpop.f32.mrf.mxu0
  %v521 = vpop.f32.mrf.mxu0
  %v522 = vadd.f32 %v85, %v521
  %v523 = vpop.f32.mrf.mxu0
  %524 = vmatprep.mubr.bf16.mxu0 0
  %525 = vmatmul.mubr.bf16.gmra.mxu0 %v303
  %v526 = vpop.f32.mrf.mxu0
  %v527 = vadd.f32 %v85, %v526
  %v528 = vpop.f32.mrf.mxu0
  %v529 = vpop.f32.mrf.mxu0
  %v530 = vadd.f32 %v85, %v529
  %v531 = vpop.f32.mrf.mxu0
  %532 = vmatprep.mubr.bf16.mxu0 0
  %533 = vmatmul.mubr.bf16.gmra.mxu0 %v306
  %v534 = vpop.f32.mrf.mxu0
  %v535 = vadd.f32 %v85, %v534
  %v536 = vpop.f32.mrf.mxu0
  %v537 = vpop.f32.mrf.mxu0
  %v538 = vadd.f32 %v85, %v537
  %v539 = vpop.f32.mrf.mxu0
  %540 = vmatprep.mubr.bf16.mxu0 0
  %541 = vmatmul.mubr.bf16.gmra.mxu0 %v309
  %v542 = vpop.f32.mrf.mxu0
  %v543 = vadd.f32 %v85, %v542
  %v544 = vpop.f32.mrf.mxu0
  %v545 = vpop.f32.mrf.mxu0
  %v546 = vadd.f32 %v85, %v545
  %v547 = vpop.f32.mrf.mxu0
  %548 = vmatprep.mubr.bf16.mxu0 0
  %549 = vmatmul.mubr.bf16.gmra.mxu0 %v312
  %v550 = vpop.f32.mrf.mxu0
  %v551 = vadd.f32 %v85, %v550
  %v552 = vpop.f32.mrf.mxu0
  %v553 = vpop.f32.mrf.mxu0
  %v554 = vadd.f32 %v85, %v553
  %v555 = vpop.f32.mrf.mxu0
  %556 = vmatprep.mubr.bf16.mxu0 0
  %557 = vmatmul.mubr.bf16.gmra.mxu0 %v315
  %v558 = vpop.f32.mrf.mxu0
  %v559 = vadd.f32 %v85, %v558
  %v560 = vpop.f32.mrf.mxu0
  %v561 = vpop.f32.mrf.mxu0
  %v562 = vadd.f32 %v85, %v561
  %v563 = vpop.f32.mrf.mxu0
  %564 = vmatprep.mubr.bf16.mxu0 0
  %565 = vmatmul.mubr.bf16.gmra.mxu0 %v318
  %v566 = vpop.f32.mrf.mxu0
  %v567 = vadd.f32 %v85, %v566
  %v568 = vpop.f32.mrf.mxu0
  %v569 = vpop.f32.mrf.mxu0
  %v570 = vadd.f32 %v85, %v569
  %v571 = vpop.f32.mrf.mxu0
  %572 = vmatprep.mubr.bf16.mxu0 0
  %573 = vmatmul.mubr.bf16.gmra.mxu0 %v321
  %v574 = vpop.f32.mrf.mxu0
  %v575 = vadd.f32 %v85, %v574
  %v576 = vpop.f32.mrf.mxu0
  %v577 = vpop.f32.mrf.mxu0
  %v578 = vadd.f32 %v85, %v577
  %v579 = vpop.f32.mrf.mxu0
  %580 = vmatprep.mubr.bf16.mxu0 0
  %581 = vmatmul.mubr.bf16.gmra.mxu0 %v324
  %v582 = vpop.f32.mrf.mxu0
  %v583 = vadd.f32 %v85, %v582
  %v584 = vpop.f32.mrf.mxu0
  %v585 = vpop.f32.mrf.mxu0
  %v586 = vadd.f32 %v85, %v585
  %v587 = vpop.f32.mrf.mxu0
  %588 = vmatprep.mubr.bf16.mxu0 0
  %589 = vmatmul.mubr.bf16.gmra.mxu0 %v327
  %v590 = vpop.f32.mrf.mxu0
  %v591 = vadd.f32 %v85, %v590
  %v592 = vpop.f32.mrf.mxu0
  %v593 = vpop.f32.mrf.mxu0
  %v594 = vadd.f32 %v85, %v593
  %v595 = vpop.f32.mrf.mxu0
  %596 = vmatprep.mubr.bf16.mxu0 0
  %597 = vmatmul.mubr.bf16.gmra.mxu0 %v330
  %v598 = vpop.f32.mrf.mxu0
  %v599 = vadd.f32 %v85, %v598
  %v600 = vpop.f32.mrf.mxu0
  %v601 = vpop.f32.mrf.mxu0
  %v602 = vadd.f32 %v85, %v601
  %v603 = vpop.f32.mrf.mxu0
  %604 = vmatprep.mubr.bf16.mxu0 0
  %605 = vmatmul.mubr.bf16.gmra.mxu0 %v333
  %v606 = vpop.f32.mrf.mxu0
  %v607 = vadd.f32 %v85, %v606
  %v608 = vpop.f32.mrf.mxu0
  %v609 = vpop.f32.mrf.mxu0
  %v610 = vadd.f32 %v85, %v609
  %v611 = vpop.f32.mrf.mxu0
  %612 = vmatprep.mubr.bf16.mxu0 0
  %613 = vmatmul.mubr.bf16.gmra.mxu0 %v336
  %v614 = vpop.f32.mrf.mxu0
  %v615 = vadd.f32 %v85, %v614
  %v616 = vpop.f32.mrf.mxu0
  %v617 = vpop.f32.mrf.mxu0
  %v618 = vadd.f32 %v85, %v617
  %v619 = vpop.f32.mrf.mxu0
  %620 = vmatprep.mubr.bf16.mxu0 0
  %621 = vmatmul.mubr.bf16.gmra.mxu0 %v339
  %v622 = vpop.f32.mrf.mxu0
  %v623 = vadd.f32 %v85, %v622
  %v624 = vpop.f32.mrf.mxu0
  %v625 = vpop.f32.mrf.mxu0
  %v626 = vadd.f32 %v85, %v625
  %v627 = vpop.f32.mrf.mxu0
  %628 = vmatprep.mubr.bf16.mxu0 0
  %629 = vmatmul.mubr.bf16.gmra.mxu0 %v342
  %v630 = vpop.f32.mrf.mxu0
  %v631 = vadd.f32 %v85, %v630
  %v632 = vpop.f32.mrf.mxu0
  %v633 = vpop.f32.mrf.mxu0
  %v634 = vadd.f32 %v85, %v633
  %v635 = vpop.f32.mrf.mxu0
  %636 = vdwg.mxu0
  %v637 = vmax.f32 %v383, 0.0
  %v638 = vmax.f32 %v386, 0.0
  %v639 = vmax.f32 %v391, 0.0
  %v640 = vmax.f32 %v394, 0.0
  %v641 = vmax.f32 %v399, 0.0
  %v642 = vmax.f32 %v402, 0.0
  %v643 = vmax.f32 %v407, 0.0
  %v644 = vmax.f32 %v410, 0.0
  %v645 = vmax.f32 %v415, 0.0
  %v646 = vmax.f32 %v418, 0.0
  %v647 = vmax.f32 %v423, 0.0
  %v648 = vmax.f32 %v426, 0.0
  %v649 = vmax.f32 %v431, 0.0
  %v650 = vmax.f32 %v434, 0.0
  %v651 = vmax.f32 %v439, 0.0
  %v652 = vmax.f32 %v442, 0.0
  %v653 = vmax.f32 %v447, 0.0
  %v654 = vmax.f32 %v450, 0.0
  %v655 = vmax.f32 %v455, 0.0
  %v656 = vmax.f32 %v458, 0.0
  %v657 = vmax.f32 %v463, 0.0
  %v658 = vmax.f32 %v466, 0.0
  %v659 = vmax.f32 %v471, 0.0
  %v660 = vmax.f32 %v474, 0.0
  %v661 = vmax.f32 %v479, 0.0
  %v662 = vmax.f32 %v482, 0.0
  %v663 = vmax.f32 %v487, 0.0
  %v664 = vmax.f32 %v490, 0.0
  %v665 = vmax.f32 %v495, 0.0
  %v666 = vmax.f32 %v498, 0.0
  %v667 = vmax.f32 %v503, 0.0
  %v668 = vmax.f32 %v506, 0.0
  %v669 = vmax.f32 %v511, 0.0
  %v670 = vmax.f32 %v514, 0.0
  %v671 = vmax.f32 %v519, 0.0
  %v672 = vmax.f32 %v522, 0.0
  %v673 = vmax.f32 %v527, 0.0
  %v674 = vmax.f32 %v530, 0.0
  %v675 = vmax.f32 %v535, 0.0
  %v676 = vmax.f32 %v538, 0.0
  %v677 = vmax.f32 %v543, 0.0
  %v678 = vmax.f32 %v546, 0.0
  %v679 = vmax.f32 %v551, 0.0
  %v680 = vmax.f32 %v554, 0.0
  %v681 = vmax.f32 %v559, 0.0
  %v682 = vmax.f32 %v562, 0.0
  %v683 = vmax.f32 %v567, 0.0
  %v684 = vmax.f32 %v570, 0.0
  %v685 = vmax.f32 %v575, 0.0
  %v686 = vmax.f32 %v578, 0.0
  %v687 = vmax.f32 %v583, 0.0
  %v688 = vmax.f32 %v586, 0.0
  %v689 = vmax.f32 %v591, 0.0
  %v690 = vmax.f32 %v594, 0.0
  %v691 = vmax.f32 %v599, 0.0
  %v692 = vmax.f32 %v602, 0.0
  %v693 = vmax.f32 %v607, 0.0
  %v694 = vmax.f32 %v610, 0.0
  %v695 = vmax.f32 %v615, 0.0
  %v696 = vmax.f32 %v618, 0.0
  %v697 = vmax.f32 %v623, 0.0
  %v698 = vmax.f32 %v626, 0.0
  %v699 = vmax.f32 %v631, 0.0
  %v700 = vmax.f32 %v634, 0.0
  %v701 = vpack.c.bf16 %v638, %v637
  %v702 = vpack.c.bf16 %v640, %v639
  %v703 = vpack.c.bf16 %v642, %v641
  %v704 = vpack.c.bf16 %v644, %v643
  %v705 = vpack.c.bf16 %v646, %v645
  %v706 = vpack.c.bf16 %v648, %v647
  %v707 = vpack.c.bf16 %v650, %v649
  %v708 = vpack.c.bf16 %v652, %v651
  %v709 = vpack.c.bf16 %v654, %v653
  %v710 = vpack.c.bf16 %v656, %v655
  %v711 = vpack.c.bf16 %v658, %v657
  %v712 = vpack.c.bf16 %v660, %v659
  %v713 = vpack.c.bf16 %v662, %v661
  %v714 = vpack.c.bf16 %v664, %v663
  %v715 = vpack.c.bf16 %v666, %v665
  %v716 = vpack.c.bf16 %v668, %v667
  %v717 = vpack.c.bf16 %v670, %v669
  %v718 = vpack.c.bf16 %v672, %v671
  %v719 = vpack.c.bf16 %v674, %v673
  %v720 = vpack.c.bf16 %v676, %v675
  %v721 = vpack.c.bf16 %v678, %v677
  %v722 = vpack.c.bf16 %v680, %v679
  %v723 = vpack.c.bf16 %v682, %v681
  %v724 = vpack.c.bf16 %v684, %v683
  %v725 = vpack.c.bf16 %v686, %v685
  %v726 = vpack.c.bf16 %v688, %v687
  %v727 = vpack.c.bf16 %v690, %v689
  %v728 = vpack.c.bf16 %v692, %v691
  %v729 = vpack.c.bf16 %v694, %v693
  %v730 = vpack.c.bf16 %v696, %v695
  %v731 = vpack.c.bf16 %v698, %v697
  %v732 = vpack.c.bf16 %v700, %v699
  %v765 = vunpack.c.l.b16 %v701
  %v766 = vunpack.c.h.b16 %v701
  %v767 = vunpack.c.l.b16 %v702
  %v768 = vunpack.c.h.b16 %v702
  %v769 = vunpack.c.l.b16 %v703
  %v770 = vunpack.c.h.b16 %v703
  %v771 = vunpack.c.l.b16 %v704
  %v772 = vunpack.c.h.b16 %v704
  %v773 = vunpack.c.l.b16 %v705
  %v774 = vunpack.c.h.b16 %v705
  %v775 = vunpack.c.l.b16 %v706
  %v776 = vunpack.c.h.b16 %v706
  %v777 = vunpack.c.l.b16 %v707
  %v778 = vunpack.c.h.b16 %v707
  %v779 = vunpack.c.l.b16 %v708
  %v780 = vunpack.c.h.b16 %v708
  %v781 = vunpack.c.l.b16 %v709
  %v782 = vunpack.c.h.b16 %v709
  %v783 = vunpack.c.l.b16 %v710
  %v784 = vunpack.c.h.b16 %v710
  %v785 = vunpack.c.l.b16 %v711
  %v786 = vunpack.c.h.b16 %v711
  %v787 = vunpack.c.l.b16 %v712
  %v788 = vunpack.c.h.b16 %v712
  %v789 = vunpack.c.l.b16 %v713
  %v790 = vunpack.c.h.b16 %v713
  %v791 = vunpack.c.l.b16 %v714
  %v792 = vunpack.c.h.b16 %v714
  %v793 = vunpack.c.l.b16 %v715
  %v794 = vunpack.c.h.b16 %v715
  %v795 = vunpack.c.l.b16 %v716
  %v796 = vunpack.c.h.b16 %v716
  %v797 = vunpack.c.l.b16 %v717
  %v798 = vunpack.c.h.b16 %v717
  %v799 = vunpack.c.l.b16 %v718
  %v800 = vunpack.c.h.b16 %v718
  %v801 = vunpack.c.l.b16 %v719
  %v802 = vunpack.c.h.b16 %v719
  %v803 = vunpack.c.l.b16 %v720
  %v804 = vunpack.c.h.b16 %v720
  %v805 = vunpack.c.l.b16 %v721
  %v806 = vunpack.c.h.b16 %v721
  %v807 = vunpack.c.l.b16 %v722
  %v808 = vunpack.c.h.b16 %v722
  %v809 = vunpack.c.l.b16 %v723
  %v810 = vunpack.c.h.b16 %v723
  %v811 = vunpack.c.l.b16 %v724
  %v812 = vunpack.c.h.b16 %v724
  %v813 = vunpack.c.l.b16 %v725
  %v814 = vunpack.c.h.b16 %v725
  %v815 = vunpack.c.l.b16 %v726
  %v816 = vunpack.c.h.b16 %v726
  %v817 = vunpack.c.l.b16 %v727
  %v818 = vunpack.c.h.b16 %v727
  %v819 = vunpack.c.l.b16 %v728
  %v820 = vunpack.c.h.b16 %v728
  %v821 = vunpack.c.l.b16 %v729
  %v822 = vunpack.c.h.b16 %v729
  %v823 = vunpack.c.l.b16 %v730
  %v824 = vunpack.c.h.b16 %v730
  %v825 = vunpack.c.l.b16 %v731
  %v826 = vunpack.c.h.b16 %v731
  %v827 = vunpack.c.l.b16 %v732
  %v828 = vunpack.c.h.b16 %v732
  %v829 = vpack.c.b16 %v765, %v765
  %v830 = vpack.c.b16 %v766, %v766
  %v831 = vpack.c.b16 %v767, %v767
  %v832 = vpack.c.b16 %v768, %v768
  %v833 = vpack.c.b16 %v769, %v769
  %v834 = vpack.c.b16 %v770, %v770
  %v835 = vpack.c.b16 %v771, %v771
  %v836 = vpack.c.b16 %v772, %v772
  %v837 = vpack.c.b16 %v773, %v773
  %v838 = vpack.c.b16 %v774, %v774
  %v839 = vpack.c.b16 %v775, %v775
  %v840 = vpack.c.b16 %v776, %v776
  %v841 = vpack.c.b16 %v777, %v777
  %v842 = vpack.c.b16 %v778, %v778
  %v843 = vpack.c.b16 %v779, %v779
  %v844 = vpack.c.b16 %v780, %v780
  %v845 = vpack.c.b16 %v781, %v781
  %v846 = vpack.c.b16 %v782, %v782
  %v847 = vpack.c.b16 %v783, %v783
  %v848 = vpack.c.b16 %v784, %v784
  %v849 = vpack.c.b16 %v785, %v785
  %v850 = vpack.c.b16 %v786, %v786
  %v851 = vpack.c.b16 %v787, %v787
  %v852 = vpack.c.b16 %v788, %v788
  %v853 = vpack.c.b16 %v789, %v789
  %v854 = vpack.c.b16 %v790, %v790
  %v855 = vpack.c.b16 %v791, %v791
  %v856 = vpack.c.b16 %v792, %v792
  %v857 = vpack.c.b16 %v793, %v793
  %v858 = vpack.c.b16 %v794, %v794
  %v859 = vpack.c.b16 %v795, %v795
  %v860 = vpack.c.b16 %v796, %v796
  %v861 = vpack.c.b16 %v797, %v797
  %v862 = vpack.c.b16 %v798, %v798
  %v863 = vpack.c.b16 %v799, %v799
  %v864 = vpack.c.b16 %v800, %v800
  %v865 = vpack.c.b16 %v801, %v801
  %v866 = vpack.c.b16 %v802, %v802
  %v867 = vpack.c.b16 %v803, %v803
  %v868 = vpack.c.b16 %v804, %v804
  %v869 = vpack.c.b16 %v805, %v805
  %v870 = vpack.c.b16 %v806, %v806
  %v871 = vpack.c.b16 %v807, %v807
  %v872 = vpack.c.b16 %v808, %v808
  %v873 = vpack.c.b16 %v809, %v809
  %v874 = vpack.c.b16 %v810, %v810
  %v875 = vpack.c.b16 %v811, %v811
  %v876 = vpack.c.b16 %v812, %v812
  %v877 = vpack.c.b16 %v813, %v813
  %v878 = vpack.c.b16 %v814, %v814
  %v879 = vpack.c.b16 %v815, %v815
  %v880 = vpack.c.b16 %v816, %v816
  %v881 = vpack.c.b16 %v817, %v817
  %v882 = vpack.c.b16 %v818, %v818
  %v883 = vpack.c.b16 %v819, %v819
  %v884 = vpack.c.b16 %v820, %v820
  %v885 = vpack.c.b16 %v821, %v821
  %v886 = vpack.c.b16 %v822, %v822
  %v887 = vpack.c.b16 %v823, %v823
  %v888 = vpack.c.b16 %v824, %v824
  %v889 = vpack.c.b16 %v825, %v825
  %v890 = vpack.c.b16 %v826, %v826
  %v891 = vpack.c.b16 %v827, %v827
  %v892 = vpack.c.b16 %v828, %v828
  %vm957 = vcmask 27648
  %958 = vst.msk [vmem:[%s3] sm:$0xf] %vm957, %v829
  %959 = vst.msk [vmem:[%s3 + $0x4] sm:$0xf] %vm957, %v830
  %960 = vst.msk [vmem:[%s3 + $0x8] sm:$0xf] %vm957, %v831
  %961 = vst.msk [vmem:[%s3 + $0xc] sm:$0xf] %vm957, %v832
  %962 = vst.msk [vmem:[%s3 + $0x10] sm:$0xf] %vm957, %v833
  %963 = vst.msk [vmem:[%s3 + $0x14] sm:$0xf] %vm957, %v834
  %964 = vst.msk [vmem:[%s3 + $0x18] sm:$0xf] %vm957, %v835
  %965 = vst.msk [vmem:[%s3 + $0x1c] sm:$0xf] %vm957, %v836
  %966 = vst.msk [vmem:[%s3 + $0x20] sm:$0xf] %vm957, %v837
  %967 = vst.msk [vmem:[%s3 + $0x24] sm:$0xf] %vm957, %v838
  %968 = vst.msk [vmem:[%s3 + $0x28] sm:$0xf] %vm957, %v839
  %969 = vst.msk [vmem:[%s3 + $0x2c] sm:$0xf] %vm957, %v840
  %970 = vst.msk [vmem:[%s3 + $0x30] sm:$0xf] %vm957, %v841
  %971 = vst.msk [vmem:[%s3 + $0x34] sm:$0xf] %vm957, %v842
  %972 = vst.msk [vmem:[%s3 + $0x38] sm:$0xf] %vm957, %v843
  %973 = vst.msk [vmem:[%s3 + $0x3c] sm:$0xf] %vm957, %v844
  %974 = vst.msk [vmem:[%s3 + $0x40] sm:$0xf] %vm957, %v845
  %975 = vst.msk [vmem:[%s3 + $0x44] sm:$0xf] %vm957, %v846
  %976 = vst.msk [vmem:[%s3 + $0x48] sm:$0xf] %vm957, %v847
  %977 = vst.msk [vmem:[%s3 + $0x4c] sm:$0xf] %vm957, %v848
  %978 = vst.msk [vmem:[%s3 + $0x50] sm:$0xf] %vm957, %v849
  %979 = vst.msk [vmem:[%s3 + $0x54] sm:$0xf] %vm957, %v850
  %980 = vst.msk [vmem:[%s3 + $0x58] sm:$0xf] %vm957, %v851
  %981 = vst.msk [vmem:[%s3 + $0x5c] sm:$0xf] %vm957, %v852
  %982 = vst.msk [vmem:[%s3 + $0x60] sm:$0xf] %vm957, %v853
  %983 = vst.msk [vmem:[%s3 + $0x64] sm:$0xf] %vm957, %v854
  %984 = vst.msk [vmem:[%s3 + $0x68] sm:$0xf] %vm957, %v855
  %985 = vst.msk [vmem:[%s3 + $0x6c] sm:$0xf] %vm957, %v856
  %986 = vst.msk [vmem:[%s3 + $0x70] sm:$0xf] %vm957, %v857
  %987 = vst.msk [vmem:[%s3 + $0x74] sm:$0xf] %vm957, %v858
  %988 = vst.msk [vmem:[%s3 + $0x78] sm:$0xf] %vm957, %v859
  %989 = vst.msk [vmem:[%s3 + $0x7c] sm:$0xf] %vm957, %v860
  %990 = vst.msk [vmem:[%s3 + $0x80] sm:$0xf] %vm957, %v861
  %991 = vst.msk [vmem:[%s3 + $0x84] sm:$0xf] %vm957, %v862
  %992 = vst.msk [vmem:[%s3 + $0x88] sm:$0xf] %vm957, %v863
  %993 = vst.msk [vmem:[%s3 + $0x8c] sm:$0xf] %vm957, %v864
  %994 = vst.msk [vmem:[%s3 + $0x90] sm:$0xf] %vm957, %v865
  %995 = vst.msk [vmem:[%s3 + $0x94] sm:$0xf] %vm957, %v866
  %996 = vst.msk [vmem:[%s3 + $0x98] sm:$0xf] %vm957, %v867
  %997 = vst.msk [vmem:[%s3 + $0x9c] sm:$0xf] %vm957, %v868
  %998 = vst.msk [vmem:[%s3 + $0xa0] sm:$0xf] %vm957, %v869
  %999 = vst.msk [vmem:[%s3 + $0xa4] sm:$0xf] %vm957, %v870
  %1000 = vst.msk [vmem:[%s3 + $0xa8] sm:$0xf] %vm957, %v871
  %1001 = vst.msk [vmem:[%s3 + $0xac] sm:$0xf] %vm957, %v872
  %1002 = vst.msk [vmem:[%s3 + $0xb0] sm:$0xf] %vm957, %v873
  %1003 = vst.msk [vmem:[%s3 + $0xb4] sm:$0xf] %vm957, %v874
  %1004 = vst.msk [vmem:[%s3 + $0xb8] sm:$0xf] %vm957, %v875
  %1005 = vst.msk [vmem:[%s3 + $0xbc] sm:$0xf] %vm957, %v876
  %1006 = vst.msk [vmem:[%s3 + $0xc0] sm:$0xf] %vm957, %v877
  %1007 = vst.msk [vmem:[%s3 + $0xc4] sm:$0xf] %vm957, %v878
  %1008 = vst.msk [vmem:[%s3 + $0xc8] sm:$0xf] %vm957, %v879
  %1009 = vst.msk [vmem:[%s3 + $0xcc] sm:$0xf] %vm957, %v880
  %1010 = vst.msk [vmem:[%s3 + $0xd0] sm:$0xf] %vm957, %v881
  %1011 = vst.msk [vmem:[%s3 + $0xd4] sm:$0xf] %vm957, %v882
  %1012 = vst.msk [vmem:[%s3 + $0xd8] sm:$0xf] %vm957, %v883
  %1013 = vst.msk [vmem:[%s3 + $0xdc] sm:$0xf] %vm957, %v884
  %1014 = vst.msk [vmem:[%s3 + $0xe0] sm:$0xf] %vm957, %v885
  %1015 = vst.msk [vmem:[%s3 + $0xe4] sm:$0xf] %vm957, %v886
  %1016 = vst.msk [vmem:[%s3 + $0xe8] sm:$0xf] %vm957, %v887
  %1017 = vst.msk [vmem:[%s3 + $0xec] sm:$0xf] %vm957, %v888
  %1018 = vst.msk [vmem:[%s3 + $0xf0] sm:$0xf] %vm957, %v889
  %1019 = vst.msk [vmem:[%s3 + $0xf4] sm:$0xf] %vm957, %v890
  %1020 = vst.msk [vmem:[%s3 + $0xf8] sm:$0xf] %vm957, %v891
  %1021 = vst.msk [vmem:[%s3 + $0xfc] sm:$0xf] %vm957, %v892
  // Predicated region
  $region14: #{bottleneck_forward.3} parent=0 // pred_check
    _
  $region15: #{bottleneck_forward.3} parent=0 // pred_check_branch
    %1023 = sbr.rel (0) target = $region17
  $region16: #{bottleneck_forward.3} parent=0 // pred_region
    _
  $region17: #{bottleneck_forward.3} parent=0 // pred_fallthru
    _
  // Predicated region
  $region18: #{bottleneck_forward.3} parent=0 // pred_check
    _
  $region19: #{bottleneck_forward.3} parent=0 // pred_check_branch
    %1025 = sbr.rel (0) target = $region21
  $region20: #{bottleneck_forward.3} parent=0 // pred_region
    _
  $region21: #{bottleneck_forward.3} parent=0 // pred_fallthru
    _

</llo_original>
